<compile_context>
chip_gen: v7x
topology: tpu7x:2x2x1
jax: 0.10.0
libtpu: 0.0.40
codegen_flags: <defaults>
</compile_context>

<pallas_src>
import jax
import jax.numpy as jnp
from jax.experimental import pallas as pl
from jax.experimental.pallas import tpu as pltpu


def _bilinear_kernel(t1_ref, t2_ref, w_ref, b_ref, o_ref):
    tb, X = t1_ref.shape
    Y = t2_ref.shape[1]

    t1 = t1_ref[...]                                     # (tb, X)
    t2 = t2_ref[...]                                     # (tb, Y)

    # Per-row outer product, flattened to the lane-dense contraction axis
    # K = Y*X:  outer[b, y*X + x] = t2[b, y] * t1[b, x].
    outer = (t2[:, :, None] * t1[:, None, :]).reshape(tb, Y * X)

    # Single 2-D MXU matmul over K = Y*X; accumulate in f32.
    acc = jnp.dot(outer, w_ref[...], preferred_element_type=jnp.float32)  # (tb, Zp)

    o_ref[...] = (acc + b_ref[...].astype(jnp.float32)).astype(o_ref.dtype)


def _round_up(x, m):
    return ((x + m - 1) // m) * m


def bilinear(t1, t2, weight, bias=None, *, tb=None, vmem_budget=40 << 20):
    """Bilinear forward: out = einsum('...x,zyx,...y->...z', t1, weight, t2) + bias.

    t1: (..., in1), t2: (..., in2), weight: (out, in2, in1), bias: (out,) or None.
    """
    X = t1.shape[-1]
    Y = t2.shape[-1]
    lead = t1.shape[:-1]
    assert t2.shape[:-1] == lead, "tensor1 / tensor2 batch mismatch"
    Z, Y2, X2 = weight.shape
    assert (Y2, X2) == (Y, X), "weight shape mismatch"

    B = 1
    for d in lead:
        B *= int(d)
    t1 = t1.reshape(B, X)
    t2 = t2.reshape(B, Y)

    K = Y * X
    Zp = _round_up(Z, 128)          # lane-dense output / weight columns

    # Pre-flatten the weight to a lane-dense 2-D slab:
    #   w_flat[y*X + x, z] = weight[z, y, x]   (zero-padded to Zp columns)
    w_flat = jnp.transpose(weight.reshape(Z, K))          # (K, Z)
    if Zp != Z:
        w_flat = jnp.pad(w_flat, ((0, 0), (0, Zp - Z)))
    if bias is None:
        bias2d = jnp.zeros((1, Zp), jnp.float32)
    else:
        bias2d = jnp.pad(bias.reshape(1, Z).astype(jnp.float32),
                         ((0, 0), (0, Zp - Z)))

    in_bytes = jnp.dtype(t1.dtype).itemsize
    w_bytes = jnp.dtype(w_flat.dtype).itemsize

    # Resident slab (weight + bias; conservatively assume double buffering).
    resident = 2 * (K * Zp * w_bytes + Zp * 4)

    def _per_step(cand):
        # double-buffered t1/t2/out tiles + in-kernel (tb,Y,X)+(tb,K) f32 temps
        return 2 * cand * (X + Y + Zp) * in_bytes + 2 * cand * K * 4

    if tb is None:
        tb = 8
        for cand in (512, 256, 128, 64, 32, 16, 8):
            if resident + _per_step(cand) <= vmem_budget:
                tb = cand
                break
    # No point tiling past the (padded) batch itself; keep a multiple of 8.
    tb = max(8, min(_round_up(tb, 8), _round_up(B, 8)))

    # Pad ragged batches instead of asserting divisibility.
    Bp = _round_up(B, tb)
    if Bp != B:
        pad = Bp - B
        t1 = jnp.pad(t1, ((0, pad), (0, 0)))
        t2 = jnp.pad(t2, ((0, pad), (0, 0)))

    # Leave headroom below v7x's 64 MiB physical VMEM.
    vmem_limit = int(min(max(2 * (resident + _per_step(tb)), 32 << 20), 56 << 20))

    out = pl.pallas_call(
        _bilinear_kernel,
        out_shape=jax.ShapeDtypeStruct((Bp, Zp), t1.dtype),
        grid_spec=pltpu.PrefetchScalarGridSpec(
            num_scalar_prefetch=0,
            grid=(Bp // tb,),
            in_specs=[
                pl.BlockSpec((tb, X), lambda i: (i, 0)),    # tensor1 tile
                pl.BlockSpec((tb, Y), lambda i: (i, 0)),    # tensor2 tile
                pl.BlockSpec((K, Zp), lambda i: (0, 0)),    # flattened weight, resident
                pl.BlockSpec((1, Zp), lambda i: (0, 0)),    # bias, resident
            ],
            out_specs=pl.BlockSpec((tb, Zp), lambda i: (i, 0)),
        ),
        compiler_params=pltpu.CompilerParams(
            dimension_semantics=("parallel",),
            vmem_limit_bytes=vmem_limit,
        ),
    )(t1, t2, w_flat, bias2d)

    return out[:B, :Z].reshape(*lead, Z)


if __name__ == "__main__":
    key = jax.random.PRNGKey(0)
    B, in1, in2, out_f = 16, 32, 24, 16    # small synthetic shapes (Y*X = 768)

    kw, k1, k2 = jax.random.split(key, 3)

    # Deterministic parameter init mirroring reset_parameters():
    #   weight ~ U(-bound, +bound),  bound = max(in1, in2) ** -0.5 ; bias = 0
    bound = max(in1, in2) ** (-0.5)
    weight = jax.random.uniform(kw, (out_f, in2, in1), jnp.float32, -bound, bound)
    bias = jnp.zeros((out_f,), jnp.float32)

    tensor1 = jax.random.normal(k1, (B, in1), jnp.float32)
    tensor2 = jax.random.normal(k2, (B, in2), jnp.float32)

    result = bilinear(tensor1, tensor2, weight, bias)
    result = jax.block_until_ready(result)

    # Pure-JAX reference for correctness.
    ref = jnp.einsum('bx,zyx,by->bz', tensor1, weight, tensor2) + bias
    assert result.shape == (B, out_f)
    assert jnp.allclose(result, ref, atol=1e-4, rtol=1e-4), "mismatch vs reference"

    print("KERNEL_OK")
</pallas_src>

<mosaic_0001>
module attributes {stable_mosaic.version = 11 : i64} {
  func.func @_bilinear_kernel(%arg0: i32, %arg1: memref<16x32xf32, #tpu.memory_space<vmem>>, %arg2: memref<16x24xf32, #tpu.memory_space<vmem>>, %arg3: memref<768x128xf32, #tpu.memory_space<vmem>>, %arg4: memref<1x128xf32, #tpu.memory_space<vmem>>, %arg5: memref<16x128xf32, #tpu.memory_space<vmem>>) attributes {dimension_semantics = [#tpu.dimension_semantics<parallel>], iteration_bounds = array<i64: 1>, scalar_prefetch = 0 : i64, scratch_operands = 0 : i64, tpu.core_type = #tpu.core_type<tc>, window_params = [{transform_indices = @transform_0, window_bounds = array<i64: 16, 32>}, {transform_indices = @transform_1, window_bounds = array<i64: 16, 24>}, {pipeline_mode = #tpu.pipeline_mode<synchronous>, transform_indices = @transform_2, window_bounds = array<i64: 768, 128>}, {pipeline_mode = #tpu.pipeline_mode<synchronous>, transform_indices = @transform_3, window_bounds = array<i64: 1, 128>}, {transform_indices = @transform_4, window_bounds = array<i64: 16, 128>}]} {
    %c0 = arith.constant 0 : index
    %c0_0 = arith.constant 0 : index
    %0 = vector.load %arg1[%c0, %c0_0] : memref<16x32xf32, #tpu.memory_space<vmem>>, vector<16x32xf32>
    %c0_1 = arith.constant 0 : index
    %c0_2 = arith.constant 0 : index
    %1 = vector.load %arg2[%c0_1, %c0_2] : memref<16x24xf32, #tpu.memory_space<vmem>>, vector<16x24xf32>
    %2 = vector.shape_cast %1 : vector<16x24xf32> to vector<16x24x1xf32>
    %3 = vector.shape_cast %0 : vector<16x32xf32> to vector<16x1x32xf32>
    %4 = vector.broadcast %2 : vector<16x24x1xf32> to vector<16x24x32xf32>
    %5 = vector.broadcast %3 : vector<16x1x32xf32> to vector<16x24x32xf32>
    %6 = arith.mulf %4, %5 : vector<16x24x32xf32>
    %7 = vector.shape_cast %6 : vector<16x24x32xf32> to vector<16x768xf32>
    %c0_3 = arith.constant 0 : index
    %c0_4 = arith.constant 0 : index
    %8 = vector.load %arg3[%c0_3, %c0_4] : memref<768x128xf32, #tpu.memory_space<vmem>>, vector<768x128xf32>
    %cst = arith.constant dense<0.000000e+00> : vector<16x128xf32>
    %9 = tpu.matmul %7, %8, %cst {dimension_numbers = #tpu.dot_dimension_numbers<[1], [0], [0], [1], [0, 0, 1, 1], [], []>} : vector<16x768xf32>, vector<768x128xf32>, vector<16x128xf32> -> vector<16x128xf32>
    %c0_5 = arith.constant 0 : index
    %c0_6 = arith.constant 0 : index
    %10 = vector.load %arg4[%c0_5, %c0_6] : memref<1x128xf32, #tpu.memory_space<vmem>>, vector<1x128xf32>
    %11 = vector.broadcast %10 : vector<1x128xf32> to vector<16x128xf32>
    %12 = arith.addf %9, %11 : vector<16x128xf32>
    %c0_7 = arith.constant 0 : index
    %c0_8 = arith.constant 0 : index
    %13 = vector.load %arg5[%c0_7, %c0_8] : memref<16x128xf32, #tpu.memory_space<vmem>>, vector<16x128xf32>
    tpu.vector_store %arg5[%c0_7, %c0_8], %12 {strides = array<i32>} : memref<16x128xf32, #tpu.memory_space<vmem>>, vector<16x128xf32>,
    return
  }
  func.func @transform_0(%arg0: i32) -> (i32, i32) {
    %c0_i32 = arith.constant 0 : i32
    %c0_i32_0 = arith.constant 0 : i32
    return %arg0, %c0_i32 : i32, i32
  }
  func.func @transform_1(%arg0: i32) -> (i32, i32) {
    %c0_i32 = arith.constant 0 : i32
    %c0_i32_0 = arith.constant 0 : i32
    return %arg0, %c0_i32 : i32, i32
  }
  func.func @transform_2(%arg0: i32) -> (i32, i32) {
    %c0_i32 = arith.constant 0 : i32
    %c0_i32_0 = arith.constant 0 : i32
    %c0_i32_1 = arith.constant 0 : i32
    return %c0_i32, %c0_i32_0 : i32, i32
  }
  func.func @transform_3(%arg0: i32) -> (i32, i32) {
    %c0_i32 = arith.constant 0 : i32
    %c0_i32_0 = arith.constant 0 : i32
    %c0_i32_1 = arith.constant 0 : i32
    return %c0_i32, %c0_i32_0 : i32, i32
  }
  func.func @transform_4(%arg0: i32) -> (i32, i32) {
    %c0_i32 = arith.constant 0 : i32
    %c0_i32_0 = arith.constant 0 : i32
    return %arg0, %c0_i32 : i32, i32
  }
}

</mosaic_0001>

<llo_original>
// kernel: tpu_custom_call.1
$region0: #{tpu_custom_call.1}
  #allocation0 [shape = 'u32[]', space=smem, size = 0x4, offset = 0x4, fixed_abs, tag = 'smem constant byte address 0x4 - core index']
  #allocation1 [shape = 'u32[144,128]{1,0:T(1,128)}', space=vmem, size = 0x12000, scoped, tag = 'internal scratch']
  %s0 = inlined_call_operand.hbm [shape: f32[16,32], index: 0, kind: input, shape index: {}]
  %s1 = inlined_call_operand.hbm [shape: f32[16,24], index: 1, kind: input, shape index: {}]
  %s2 = inlined_call_operand.hbm [shape: f32[768,128], index: 2, kind: input, shape index: {}]
  %s3 = inlined_call_operand.vmem [shape: f32[1,128], index: 3, kind: input, shape index: {}]
  %s4 = inlined_call_operand.hbm [shape: f32[16,128], index: 4, kind: output, shape index: {}]
  %s5 = sld [smem:[#allocation0]]
  $region38: #{tpu_custom_call.1} parent=0
    _
  %s7 = ssub.s32 1, %s5
  %s8 = scalar_select 0, %s7, %s5
  $region1: #{tpu_custom_call.1} parent=0
    #allocation2 [shape = 'u8[8192]{0}', space=vmem, size = 0x2000, scoped, tag = 'input window, operand 0, single buffered']
    #allocation3 [shape = 's32[1]{0}', space=sflag, size = 0x4, scoped, tag = 'scoped memory for tpu_custom_call.1']
    #allocation4 [shape = 's32[1]{0}', space=sflag, size = 0x4, scoped, tag = 'scoped memory for tpu_custom_call.1']
    #allocation5 [shape = 'u8[8192]{0}', space=vmem, size = 0x2000, scoped, tag = 'input window, operand 1, single buffered']
    #allocation6 [shape = 's32[1]{0}', space=sflag, size = 0x4, scoped, tag = 'scoped memory for tpu_custom_call.1']
    #allocation7 [shape = 'u8[393216]{0}', space=vmem, size = 0x60000, scoped, tag = 'input window, operand 2, single buffered']
    #allocation8 [shape = 'u8[8192]{0}', space=vmem, size = 0x2000, scoped, tag = 'output window, operand 0, single buffered']
    %9 = vsyncpa [#allocation3], 0
    %10 = vsyncpa [#allocation6], 0
    %11 = vsyncpa [#allocation4], 0
    // Predicated region
    $region2: #{tpu_custom_call.1} parent=1 // pred_check
      _
    $region3: #{tpu_custom_call.1} parent=1 // pred_check_branch
      %13 = sbr.rel (0) target = $region5
    $region4: #{tpu_custom_call.1} parent=1 // pred_region
      %s15 = ssub.s32 256, 256
      %16 = vsyncadd [#allocation3], %s15
      %s17 = sshll.u32 [#allocation2], 4
      %s18 = int_to_ptr.vmem [resolvable:$true] %s17
      %23 = dma.hbm_to_vmem [thread:$0]  %s0, 256, %s18, [#allocation3], 128, 128, 8
    $region5: #{tpu_custom_call.1} parent=1 // pred_fallthru
      _
    // Predicated region
    $region6: #{tpu_custom_call.1} parent=1 // pred_check
      _
    $region7: #{tpu_custom_call.1} parent=1 // pred_check_branch
      %25 = sbr.rel (0) target = $region9
    $region8: #{tpu_custom_call.1} parent=1 // pred_region
      %s27 = ssub.s32 256, 256
      %28 = vsyncadd [#allocation6], %s27
      %s29 = sshll.u32 [#allocation5], 4
      %s30 = int_to_ptr.vmem [resolvable:$true] %s29
      %35 = dma.hbm_to_vmem [thread:$0]  %s1, 256, %s30, [#allocation6], 128, 128, 8
    $region9: #{tpu_custom_call.1} parent=1 // pred_fallthru
      _
    // Predicated region
    $region10: #{tpu_custom_call.1} parent=1 // pred_check
      _
    $region11: #{tpu_custom_call.1} parent=1 // pred_check_branch
      %37 = sbr.rel (0) target = $region13
    $region12: #{tpu_custom_call.1} parent=1 // pred_region
      %s39 = ssub.s32 12288, 12288
      %40 = vsyncadd [#allocation6], %s39
      %s41 = sshll.u32 [#allocation7], 4
      %s42 = int_to_ptr.vmem [resolvable:$true] %s41
      %47 = dma.hbm_to_vmem [thread:$0]  %s2, 12288, %s42, [#allocation6], 128, 128, 8
    $region13: #{tpu_custom_call.1} parent=1 // pred_fallthru
      _
    // Predicated region
    $region14: #{tpu_custom_call.1} parent=1 // pred_check
      _
    $region15: #{tpu_custom_call.1} parent=1 // pred_check_branch
      %49 = sbr.rel (0) target = $region17
    $region16: #{tpu_custom_call.1} parent=1 // pred_region
      _
    $region17: #{tpu_custom_call.1} parent=1 // pred_fallthru
      _
    // Predicated region
    $region18: #{tpu_custom_call.1} parent=1 // pred_check
      _
    $region19: #{tpu_custom_call.1} parent=1 // pred_check_branch
      %51 = sbr.rel (0) target = $region21
    $region20: #{tpu_custom_call.1} parent=1 // pred_region
      %52 = dma.done [#allocation3], 256
    $region21: #{tpu_custom_call.1} parent=1 // pred_fallthru
      _
    // Predicated region
    $region22: #{tpu_custom_call.1} parent=1 // pred_check
      _
    $region23: #{tpu_custom_call.1} parent=1 // pred_check_branch
      %54 = sbr.rel (0) target = $region25
    $region24: #{tpu_custom_call.1} parent=1 // pred_region
      %55 = dma.done [#allocation6], 256
    $region25: #{tpu_custom_call.1} parent=1 // pred_fallthru
      _
    // Predicated region
    $region26: #{tpu_custom_call.1} parent=1 // pred_check
      _
    $region27: #{tpu_custom_call.1} parent=1 // pred_check_branch
      %57 = sbr.rel (0) target = $region29
    $region28: #{tpu_custom_call.1} parent=1 // pred_region
      %58 = dma.done [#allocation6], 12288
    $region29: #{tpu_custom_call.1} parent=1 // pred_fallthru
      _
    %v59 = vld [vmem:[#allocation2] sm:$0xff]
    %v60 = vld [vmem:[#allocation2 + $0x8] sm:$0xff]
    %v61 = vld [vmem:[#allocation5] sm:$0xff]
    %v62 = vld [vmem:[#allocation5 + $0x8] sm:$0xff]
    %v63 = vlaneseq
    %v64 = vshrl.u32 %v63, 7
    %v65 = vsub.s32 0, %v64
    %v66 = vrot.slane %v61, %v65
    %68 = vbcast.lane.b32.xlu0 %v66, 256
    %v69 = vpop.permute.xlu0 %68
    %s71 = sor.u32 256, 8
    %72 = vbcast.lane.b32.xlu0 %v66, %s71
    %v73 = vpop.permute.xlu0 %72
    %s75 = sor.u32 256, 16
    %76 = vbcast.lane.b32.xlu0 %v66, %s75
    %v77 = vpop.permute.xlu0 %76
    %v78 = vlaneseq
    %v79 = vshrl.u32 %v78, 7
    %v80 = vsub.s32 1, %v79
    %v81 = vrot.slane %v61, %v80
    %83 = vbcast.lane.b32.xlu0 %v81, 256
    %v84 = vpop.permute.xlu0 %83
    %s86 = sor.u32 256, 8
    %87 = vbcast.lane.b32.xlu0 %v81, %s86
    %v88 = vpop.permute.xlu0 %87
    %s90 = sor.u32 256, 16
    %91 = vbcast.lane.b32.xlu0 %v81, %s90
    %v92 = vpop.permute.xlu0 %91
    %v93 = vlaneseq
    %v94 = vshrl.u32 %v93, 7
    %v95 = vsub.s32 2, %v94
    %v96 = vrot.slane %v61, %v95
    %98 = vbcast.lane.b32.xlu0 %v96, 256
    %v99 = vpop.permute.xlu0 %98
    %s101 = sor.u32 256, 8
    %102 = vbcast.lane.b32.xlu0 %v96, %s101
    %v103 = vpop.permute.xlu0 %102
    %s105 = sor.u32 256, 16
    %106 = vbcast.lane.b32.xlu0 %v96, %s105
    %v107 = vpop.permute.xlu0 %106
    %v108 = vlaneseq
    %v109 = vshrl.u32 %v108, 7
    %v110 = vsub.s32 3, %v109
    %v111 = vrot.slane %v61, %v110
    %113 = vbcast.lane.b32.xlu0 %v111, 256
    %v114 = vpop.permute.xlu0 %113
    %s116 = sor.u32 256, 8
    %117 = vbcast.lane.b32.xlu0 %v111, %s116
    %v118 = vpop.permute.xlu0 %117
    %s120 = sor.u32 256, 16
    %121 = vbcast.lane.b32.xlu0 %v111, %s120
    %v122 = vpop.permute.xlu0 %121
    %v123 = vlaneseq
    %v124 = vshrl.u32 %v123, 7
    %v125 = vsub.s32 4, %v124
    %v126 = vrot.slane %v61, %v125
    %128 = vbcast.lane.b32.xlu0 %v126, 256
    %v129 = vpop.permute.xlu0 %128
    %s131 = sor.u32 256, 8
    %132 = vbcast.lane.b32.xlu0 %v126, %s131
    %v133 = vpop.permute.xlu0 %132
    %s135 = sor.u32 256, 16
    %136 = vbcast.lane.b32.xlu0 %v126, %s135
    %v137 = vpop.permute.xlu0 %136
    %v138 = vlaneseq
    %v139 = vshrl.u32 %v138, 7
    %v140 = vsub.s32 5, %v139
    %v141 = vrot.slane %v61, %v140
    %143 = vbcast.lane.b32.xlu0 %v141, 256
    %v144 = vpop.permute.xlu0 %143
    %s146 = sor.u32 256, 8
    %147 = vbcast.lane.b32.xlu0 %v141, %s146
    %v148 = vpop.permute.xlu0 %147
    %s150 = sor.u32 256, 16
    %151 = vbcast.lane.b32.xlu0 %v141, %s150
    %v152 = vpop.permute.xlu0 %151
    %v153 = vlaneseq
    %v154 = vshrl.u32 %v153, 7
    %v155 = vsub.s32 6, %v154
    %v156 = vrot.slane %v61, %v155
    %158 = vbcast.lane.b32.xlu0 %v156, 256
    %v159 = vpop.permute.xlu0 %158
    %s161 = sor.u32 256, 8
    %162 = vbcast.lane.b32.xlu0 %v156, %s161
    %v163 = vpop.permute.xlu0 %162
    %s165 = sor.u32 256, 16
    %166 = vbcast.lane.b32.xlu0 %v156, %s165
    %v167 = vpop.permute.xlu0 %166
    %v168 = vlaneseq
    %v169 = vshrl.u32 %v168, 7
    %v170 = vsub.s32 7, %v169
    %v171 = vrot.slane %v61, %v170
    %173 = vbcast.lane.b32.xlu0 %v171, 256
    %v174 = vpop.permute.xlu0 %173
    %s176 = sor.u32 256, 8
    %177 = vbcast.lane.b32.xlu0 %v171, %s176
    %v178 = vpop.permute.xlu0 %177
    %s180 = sor.u32 256, 16
    %181 = vbcast.lane.b32.xlu0 %v171, %s180
    %v182 = vpop.permute.xlu0 %181
    %v183 = vlaneseq
    %v184 = vshrl.u32 %v183, 7
    %v185 = vsub.s32 0, %v184
    %v186 = vrot.slane %v62, %v185
    %188 = vbcast.lane.b32.xlu0 %v186, 256
    %v189 = vpop.permute.xlu0 %188
    %s191 = sor.u32 256, 8
    %192 = vbcast.lane.b32.xlu0 %v186, %s191
    %v193 = vpop.permute.xlu0 %192
    %s195 = sor.u32 256, 16
    %196 = vbcast.lane.b32.xlu0 %v186, %s195
    %v197 = vpop.permute.xlu0 %196
    %v198 = vlaneseq
    %v199 = vshrl.u32 %v198, 7
    %v200 = vsub.s32 1, %v199
    %v201 = vrot.slane %v62, %v200
    %203 = vbcast.lane.b32.xlu0 %v201, 256
    %v204 = vpop.permute.xlu0 %203
    %s206 = sor.u32 256, 8
    %207 = vbcast.lane.b32.xlu0 %v201, %s206
    %v208 = vpop.permute.xlu0 %207
    %s210 = sor.u32 256, 16
    %211 = vbcast.lane.b32.xlu0 %v201, %s210
    %v212 = vpop.permute.xlu0 %211
    %v213 = vlaneseq
    %v214 = vshrl.u32 %v213, 7
    %v215 = vsub.s32 2, %v214
    %v216 = vrot.slane %v62, %v215
    %218 = vbcast.lane.b32.xlu0 %v216, 256
    %v219 = vpop.permute.xlu0 %218
    %s221 = sor.u32 256, 8
    %222 = vbcast.lane.b32.xlu0 %v216, %s221
    %v223 = vpop.permute.xlu0 %222
    %s225 = sor.u32 256, 16
    %226 = vbcast.lane.b32.xlu0 %v216, %s225
    %v227 = vpop.permute.xlu0 %226
    %v228 = vlaneseq
    %v229 = vshrl.u32 %v228, 7
    %v230 = vsub.s32 3, %v229
    %v231 = vrot.slane %v62, %v230
    %233 = vbcast.lane.b32.xlu0 %v231, 256
    %v234 = vpop.permute.xlu0 %233
    %s236 = sor.u32 256, 8
    %237 = vbcast.lane.b32.xlu0 %v231, %s236
    %v238 = vpop.permute.xlu0 %237
    %s240 = sor.u32 256, 16
    %241 = vbcast.lane.b32.xlu0 %v231, %s240
    %v242 = vpop.permute.xlu0 %241
    %v243 = vlaneseq
    %v244 = vshrl.u32 %v243, 7
    %v245 = vsub.s32 4, %v244
    %v246 = vrot.slane %v62, %v245
    %248 = vbcast.lane.b32.xlu0 %v246, 256
    %v249 = vpop.permute.xlu0 %248
    %s251 = sor.u32 256, 8
    %252 = vbcast.lane.b32.xlu0 %v246, %s251
    %v253 = vpop.permute.xlu0 %252
    %s255 = sor.u32 256, 16
    %256 = vbcast.lane.b32.xlu0 %v246, %s255
    %v257 = vpop.permute.xlu0 %256
    %v258 = vlaneseq
    %v259 = vshrl.u32 %v258, 7
    %v260 = vsub.s32 5, %v259
    %v261 = vrot.slane %v62, %v260
    %263 = vbcast.lane.b32.xlu0 %v261, 256
    %v264 = vpop.permute.xlu0 %263
    %s266 = sor.u32 256, 8
    %267 = vbcast.lane.b32.xlu0 %v261, %s266
    %v268 = vpop.permute.xlu0 %267
    %s270 = sor.u32 256, 16
    %271 = vbcast.lane.b32.xlu0 %v261, %s270
    %v272 = vpop.permute.xlu0 %271
    %v273 = vlaneseq
    %v274 = vshrl.u32 %v273, 7
    %v275 = vsub.s32 6, %v274
    %v276 = vrot.slane %v62, %v275
    %278 = vbcast.lane.b32.xlu0 %v276, 256
    %v279 = vpop.permute.xlu0 %278
    %s281 = sor.u32 256, 8
    %282 = vbcast.lane.b32.xlu0 %v276, %s281
    %v283 = vpop.permute.xlu0 %282
    %s285 = sor.u32 256, 16
    %286 = vbcast.lane.b32.xlu0 %v276, %s285
    %v287 = vpop.permute.xlu0 %286
    %v288 = vlaneseq
    %v289 = vshrl.u32 %v288, 7
    %v290 = vsub.s32 7, %v289
    %v291 = vrot.slane %v62, %v290
    %293 = vbcast.lane.b32.xlu0 %v291, 256
    %v294 = vpop.permute.xlu0 %293
    %s296 = sor.u32 256, 8
    %297 = vbcast.lane.b32.xlu0 %v291, %s296
    %v298 = vpop.permute.xlu0 %297
    %s300 = sor.u32 256, 16
    %301 = vbcast.lane.b32.xlu0 %v291, %s300
    %v302 = vpop.permute.xlu0 %301
    %v305 = vcombine.high %v59, %v59
    %v307 = vunpack.c.l.s4 1966171168
    %v308 = vunpack.c.0.s8 %v307
    %v309 = vlaneseq
    %v310 = vshrl.u32 %v309, 7
    %v311 = vsub.s32 %v308, %v310
    %v312 = vrot.slane %v59, %v311
    %v314 = vunpack.c.l.s4 1966171168
    %v315 = vunpack.c.0.s8 %v314
    %v316 = vlaneseq
    %v317 = vshrl.u32 %v316, 7
    %v318 = vsub.s32 %v315, %v317
    %v319 = vrot.slane %v305, %v318
    %v320 = vcombine.high %v312, %v312
    %v321 = vcombine.high %v319, %v319
    %v323 = vunpack.c.l.s4 1966171168
    %v324 = vunpack.c.0.s8 %v323
    %v325 = vlaneseq
    %v326 = vshrl.u32 %v325, 7
    %v327 = vsub.s32 %v324, %v326
    %v328 = vrot.slane %v312, %v327
    %v330 = vunpack.c.l.s4 1966171168
    %v331 = vunpack.c.0.s8 %v330
    %v332 = vlaneseq
    %v333 = vshrl.u32 %v332, 7
    %v334 = vsub.s32 %v331, %v333
    %v335 = vrot.slane %v319, %v334
    %v337 = vunpack.c.l.s4 1966171168
    %v338 = vunpack.c.0.s8 %v337
    %v339 = vlaneseq
    %v340 = vshrl.u32 %v339, 7
    %v341 = vsub.s32 %v338, %v340
    %v342 = vrot.slane %v320, %v341
    %v344 = vunpack.c.l.s4 1966171168
    %v345 = vunpack.c.0.s8 %v344
    %v346 = vlaneseq
    %v347 = vshrl.u32 %v346, 7
    %v348 = vsub.s32 %v345, %v347
    %v349 = vrot.slane %v321, %v348
    %v350 = vcombine.high %v328, %v328
    %v351 = vcombine.high %v335, %v335
    %v352 = vcombine.high %v342, %v342
    %v353 = vcombine.high %v349, %v349
    %v354 = vcombine.high %v60, %v60
    %v356 = vunpack.c.l.s4 1966171168
    %v357 = vunpack.c.0.s8 %v356
    %v358 = vlaneseq
    %v359 = vshrl.u32 %v358, 7
    %v360 = vsub.s32 %v357, %v359
    %v361 = vrot.slane %v60, %v360
    %v363 = vunpack.c.l.s4 1966171168
    %v364 = vunpack.c.0.s8 %v363
    %v365 = vlaneseq
    %v366 = vshrl.u32 %v365, 7
    %v367 = vsub.s32 %v364, %v366
    %v368 = vrot.slane %v354, %v367
    %v369 = vcombine.high %v361, %v361
    %v370 = vcombine.high %v368, %v368
    %v372 = vunpack.c.l.s4 1966171168
    %v373 = vunpack.c.0.s8 %v372
    %v374 = vlaneseq
    %v375 = vshrl.u32 %v374, 7
    %v376 = vsub.s32 %v373, %v375
    %v377 = vrot.slane %v361, %v376
    %v379 = vunpack.c.l.s4 1966171168
    %v380 = vunpack.c.0.s8 %v379
    %v381 = vlaneseq
    %v382 = vshrl.u32 %v381, 7
    %v383 = vsub.s32 %v380, %v382
    %v384 = vrot.slane %v368, %v383
    %v386 = vunpack.c.l.s4 1966171168
    %v387 = vunpack.c.0.s8 %v386
    %v388 = vlaneseq
    %v389 = vshrl.u32 %v388, 7
    %v390 = vsub.s32 %v387, %v389
    %v391 = vrot.slane %v369, %v390
    %v393 = vunpack.c.l.s4 1966171168
    %v394 = vunpack.c.0.s8 %v393
    %v395 = vlaneseq
    %v396 = vshrl.u32 %v395, 7
    %v397 = vsub.s32 %v394, %v396
    %v398 = vrot.slane %v370, %v397
    %v399 = vcombine.high %v377, %v377
    %v400 = vcombine.high %v384, %v384
    %v401 = vcombine.high %v391, %v391
    %v402 = vcombine.high %v398, %v398
    %v403 = vlaneseq
    %v404 = vshrl.u32 %v403, 7
    %v405 = vsub.s32 0, %v404
    %v406 = vrot.slane %v328, %v405
    %v407 = vlaneseq
    %v408 = vshrl.u32 %v407, 7
    %v409 = vsub.s32 0, %v408
    %v410 = vrot.slane %v342, %v409
    %v411 = vlaneseq
    %v412 = vshrl.u32 %v411, 7
    %v413 = vsub.s32 0, %v412
    %v414 = vrot.slane %v350, %v413
    %v415 = vlaneseq
    %v416 = vshrl.u32 %v415, 7
    %v417 = vsub.s32 0, %v416
    %v418 = vrot.slane %v352, %v417
    %v419 = vlaneseq
    %v420 = vshrl.u32 %v419, 7
    %v421 = vsub.s32 0, %v420
    %v422 = vrot.slane %v335, %v421
    %v423 = vlaneseq
    %v424 = vshrl.u32 %v423, 7
    %v425 = vsub.s32 0, %v424
    %v426 = vrot.slane %v349, %v425
    %v427 = vlaneseq
    %v428 = vshrl.u32 %v427, 7
    %v429 = vsub.s32 0, %v428
    %v430 = vrot.slane %v351, %v429
    %v431 = vlaneseq
    %v432 = vshrl.u32 %v431, 7
    %v433 = vsub.s32 0, %v432
    %v434 = vrot.slane %v353, %v433
    %v435 = vlaneseq
    %v436 = vshrl.u32 %v435, 7
    %v437 = vsub.s32 0, %v436
    %v438 = vrot.slane %v377, %v437
    %v439 = vlaneseq
    %v440 = vshrl.u32 %v439, 7
    %v441 = vsub.s32 0, %v440
    %v442 = vrot.slane %v391, %v441
    %v443 = vlaneseq
    %v444 = vshrl.u32 %v443, 7
    %v445 = vsub.s32 0, %v444
    %v446 = vrot.slane %v399, %v445
    %v447 = vlaneseq
    %v448 = vshrl.u32 %v447, 7
    %v449 = vsub.s32 0, %v448
    %v450 = vrot.slane %v401, %v449
    %v451 = vlaneseq
    %v452 = vshrl.u32 %v451, 7
    %v453 = vsub.s32 0, %v452
    %v454 = vrot.slane %v384, %v453
    %v455 = vlaneseq
    %v456 = vshrl.u32 %v455, 7
    %v457 = vsub.s32 0, %v456
    %v458 = vrot.slane %v398, %v457
    %v459 = vlaneseq
    %v460 = vshrl.u32 %v459, 7
    %v461 = vsub.s32 0, %v460
    %v462 = vrot.slane %v400, %v461
    %v463 = vlaneseq
    %v464 = vshrl.u32 %v463, 7
    %v465 = vsub.s32 0, %v464
    %v466 = vrot.slane %v402, %v465
    %v483 = vmul.f32 %v69, %v406
    %v484 = vmul.f32 %v73, %v406
    %v485 = vmul.f32 %v77, %v406
    %v486 = vmul.f32 %v84, %v410
    %v487 = vmul.f32 %v88, %v410
    %v488 = vmul.f32 %v92, %v410
    %v489 = vmul.f32 %v99, %v414
    %v490 = vmul.f32 %v103, %v414
    %v491 = vmul.f32 %v107, %v414
    %v492 = vmul.f32 %v114, %v418
    %v493 = vmul.f32 %v118, %v418
    %v494 = vmul.f32 %v122, %v418
    %v495 = vmul.f32 %v129, %v422
    %v496 = vmul.f32 %v133, %v422
    %v497 = vmul.f32 %v137, %v422
    %v498 = vmul.f32 %v144, %v426
    %v499 = vmul.f32 %v148, %v426
    %v500 = vmul.f32 %v152, %v426
    %v501 = vmul.f32 %v159, %v430
    %v502 = vmul.f32 %v163, %v430
    %v503 = vmul.f32 %v167, %v430
    %v504 = vmul.f32 %v174, %v434
    %v505 = vmul.f32 %v178, %v434
    %v506 = vmul.f32 %v182, %v434
    %v507 = vmul.f32 %v189, %v438
    %v508 = vmul.f32 %v193, %v438
    %v509 = vmul.f32 %v197, %v438
    %v510 = vmul.f32 %v204, %v442
    %v511 = vmul.f32 %v208, %v442
    %v512 = vmul.f32 %v212, %v442
    %v513 = vmul.f32 %v219, %v446
    %v514 = vmul.f32 %v223, %v446
    %v515 = vmul.f32 %v227, %v446
    %v516 = vmul.f32 %v234, %v450
    %v517 = vmul.f32 %v238, %v450
    %v518 = vmul.f32 %v242, %v450
    %v519 = vmul.f32 %v249, %v454
    %v520 = vmul.f32 %v253, %v454
    %v521 = vmul.f32 %v257, %v454
    %v522 = vmul.f32 %v264, %v458
    %v523 = vmul.f32 %v268, %v458
    %v524 = vmul.f32 %v272, %v458
    %v525 = vmul.f32 %v279, %v462
    %v526 = vmul.f32 %v283, %v462
    %v527 = vmul.f32 %v287, %v462
    %v528 = vmul.f32 %v294, %v466
    %v529 = vmul.f32 %v298, %v466
    %v530 = vmul.f32 %v302, %v466
    %v531 = vcombine.low %v483, %v489
    %v532 = vcombine.high %v483, %v489
    %v534 = vunpack.c.l.s4 1983009808
    %v535 = vunpack.c.0.s8 %v534
    %v536 = vlaneseq
    %v537 = vshrl.u32 %v536, 7
    %v538 = vsub.s32 %v535, %v537
    %v539 = vrot.slane %v531, %v538
    %v541 = vunpack.c.l.s4 1983009808
    %v542 = vunpack.c.0.s8 %v541
    %v543 = vlaneseq
    %v544 = vshrl.u32 %v543, 7
    %v545 = vsub.s32 %v542, %v544
    %v546 = vrot.slane %v532, %v545
    %v547 = vcombine.low %v486, %v492
    %v548 = vcombine.high %v486, %v492
    %v550 = vunpack.c.l.s4 1983009808
    %v551 = vunpack.c.0.s8 %v550
    %v552 = vlaneseq
    %v553 = vshrl.u32 %v552, 7
    %v554 = vsub.s32 %v551, %v553
    %v555 = vrot.slane %v547, %v554
    %v557 = vunpack.c.l.s4 1983009808
    %v558 = vunpack.c.0.s8 %v557
    %v559 = vlaneseq
    %v560 = vshrl.u32 %v559, 7
    %v561 = vsub.s32 %v558, %v560
    %v562 = vrot.slane %v548, %v561
    %v563 = vcombine.low %v495, %v501
    %v564 = vcombine.high %v495, %v501
    %v566 = vunpack.c.l.s4 1983009808
    %v567 = vunpack.c.0.s8 %v566
    %v568 = vlaneseq
    %v569 = vshrl.u32 %v568, 7
    %v570 = vsub.s32 %v567, %v569
    %v571 = vrot.slane %v563, %v570
    %v573 = vunpack.c.l.s4 1983009808
    %v574 = vunpack.c.0.s8 %v573
    %v575 = vlaneseq
    %v576 = vshrl.u32 %v575, 7
    %v577 = vsub.s32 %v574, %v576
    %v578 = vrot.slane %v564, %v577
    %v579 = vcombine.low %v498, %v504
    %v580 = vcombine.high %v498, %v504
    %v582 = vunpack.c.l.s4 1983009808
    %v583 = vunpack.c.0.s8 %v582
    %v584 = vlaneseq
    %v585 = vshrl.u32 %v584, 7
    %v586 = vsub.s32 %v583, %v585
    %v587 = vrot.slane %v579, %v586
    %v589 = vunpack.c.l.s4 1983009808
    %v590 = vunpack.c.0.s8 %v589
    %v591 = vlaneseq
    %v592 = vshrl.u32 %v591, 7
    %v593 = vsub.s32 %v590, %v592
    %v594 = vrot.slane %v580, %v593
    %v595 = vcombine.low %v539, %v555
    %v596 = vcombine.high %v539, %v555
    %v598 = vunpack.c.l.s4 1934713408
    %v599 = vunpack.c.0.s8 %v598
    %v600 = vlaneseq
    %v601 = vshrl.u32 %v600, 7
    %v602 = vsub.s32 %v599, %v601
    %v603 = vrot.slane %v595, %v602
    %v605 = vunpack.c.l.s4 1934713408
    %v606 = vunpack.c.0.s8 %v605
    %v607 = vlaneseq
    %v608 = vshrl.u32 %v607, 7
    %v609 = vsub.s32 %v606, %v608
    %v610 = vrot.slane %v596, %v609
    %v611 = vcombine.low %v546, %v562
    %v612 = vcombine.high %v546, %v562
    %v614 = vunpack.c.l.s4 1934713408
    %v615 = vunpack.c.0.s8 %v614
    %v616 = vlaneseq
    %v617 = vshrl.u32 %v616, 7
    %v618 = vsub.s32 %v615, %v617
    %v619 = vrot.slane %v611, %v618
    %v621 = vunpack.c.l.s4 1934713408
    %v622 = vunpack.c.0.s8 %v621
    %v623 = vlaneseq
    %v624 = vshrl.u32 %v623, 7
    %v625 = vsub.s32 %v622, %v624
    %v626 = vrot.slane %v612, %v625
    %v627 = vcombine.low %v571, %v587
    %v628 = vcombine.high %v571, %v587
    %v630 = vunpack.c.l.s4 1934713408
    %v631 = vunpack.c.0.s8 %v630
    %v632 = vlaneseq
    %v633 = vshrl.u32 %v632, 7
    %v634 = vsub.s32 %v631, %v633
    %v635 = vrot.slane %v627, %v634
    %v637 = vunpack.c.l.s4 1934713408
    %v638 = vunpack.c.0.s8 %v637
    %v639 = vlaneseq
    %v640 = vshrl.u32 %v639, 7
    %v641 = vsub.s32 %v638, %v640
    %v642 = vrot.slane %v628, %v641
    %v643 = vcombine.low %v578, %v594
    %v644 = vcombine.high %v578, %v594
    %v646 = vunpack.c.l.s4 1934713408
    %v647 = vunpack.c.0.s8 %v646
    %v648 = vlaneseq
    %v649 = vshrl.u32 %v648, 7
    %v650 = vsub.s32 %v647, %v649
    %v651 = vrot.slane %v643, %v650
    %v653 = vunpack.c.l.s4 1934713408
    %v654 = vunpack.c.0.s8 %v653
    %v655 = vlaneseq
    %v656 = vshrl.u32 %v655, 7
    %v657 = vsub.s32 %v654, %v656
    %v658 = vrot.slane %v644, %v657
    %v659 = vcombine.low %v603, %v635
    %v660 = vcombine.high %v603, %v635
    %v661 = vcombine.low %v610, %v642
    %v662 = vcombine.high %v610, %v642
    %v663 = vcombine.low %v619, %v651
    %v664 = vcombine.high %v619, %v651
    %v665 = vcombine.low %v626, %v658
    %v666 = vcombine.high %v626, %v658
    %v667 = vcombine.low %v507, %v513
    %v668 = vcombine.high %v507, %v513
    %v670 = vunpack.c.l.s4 1983009808
    %v671 = vunpack.c.0.s8 %v670
    %v672 = vlaneseq
    %v673 = vshrl.u32 %v672, 7
    %v674 = vsub.s32 %v671, %v673
    %v675 = vrot.slane %v667, %v674
    %v677 = vunpack.c.l.s4 1983009808
    %v678 = vunpack.c.0.s8 %v677
    %v679 = vlaneseq
    %v680 = vshrl.u32 %v679, 7
    %v681 = vsub.s32 %v678, %v680
    %v682 = vrot.slane %v668, %v681
    %v683 = vcombine.low %v510, %v516
    %v684 = vcombine.high %v510, %v516
    %v686 = vunpack.c.l.s4 1983009808
    %v687 = vunpack.c.0.s8 %v686
    %v688 = vlaneseq
    %v689 = vshrl.u32 %v688, 7
    %v690 = vsub.s32 %v687, %v689
    %v691 = vrot.slane %v683, %v690
    %v693 = vunpack.c.l.s4 1983009808
    %v694 = vunpack.c.0.s8 %v693
    %v695 = vlaneseq
    %v696 = vshrl.u32 %v695, 7
    %v697 = vsub.s32 %v694, %v696
    %v698 = vrot.slane %v684, %v697
    %v699 = vcombine.low %v519, %v525
    %v700 = vcombine.high %v519, %v525
    %v702 = vunpack.c.l.s4 1983009808
    %v703 = vunpack.c.0.s8 %v702
    %v704 = vlaneseq
    %v705 = vshrl.u32 %v704, 7
    %v706 = vsub.s32 %v703, %v705
    %v707 = vrot.slane %v699, %v706
    %v709 = vunpack.c.l.s4 1983009808
    %v710 = vunpack.c.0.s8 %v709
    %v711 = vlaneseq
    %v712 = vshrl.u32 %v711, 7
    %v713 = vsub.s32 %v710, %v712
    %v714 = vrot.slane %v700, %v713
    %v715 = vcombine.low %v522, %v528
    %v716 = vcombine.high %v522, %v528
    %v718 = vunpack.c.l.s4 1983009808
    %v719 = vunpack.c.0.s8 %v718
    %v720 = vlaneseq
    %v721 = vshrl.u32 %v720, 7
    %v722 = vsub.s32 %v719, %v721
    %v723 = vrot.slane %v715, %v722
    %v725 = vunpack.c.l.s4 1983009808
    %v726 = vunpack.c.0.s8 %v725
    %v727 = vlaneseq
    %v728 = vshrl.u32 %v727, 7
    %v729 = vsub.s32 %v726, %v728
    %v730 = vrot.slane %v716, %v729
    %v731 = vcombine.low %v675, %v691
    %v732 = vcombine.high %v675, %v691
    %v734 = vunpack.c.l.s4 1934713408
    %v735 = vunpack.c.0.s8 %v734
    %v736 = vlaneseq
    %v737 = vshrl.u32 %v736, 7
    %v738 = vsub.s32 %v735, %v737
    %v739 = vrot.slane %v731, %v738
    %v741 = vunpack.c.l.s4 1934713408
    %v742 = vunpack.c.0.s8 %v741
    %v743 = vlaneseq
    %v744 = vshrl.u32 %v743, 7
    %v745 = vsub.s32 %v742, %v744
    %v746 = vrot.slane %v732, %v745
    %v747 = vcombine.low %v682, %v698
    %v748 = vcombine.high %v682, %v698
    %v750 = vunpack.c.l.s4 1934713408
    %v751 = vunpack.c.0.s8 %v750
    %v752 = vlaneseq
    %v753 = vshrl.u32 %v752, 7
    %v754 = vsub.s32 %v751, %v753
    %v755 = vrot.slane %v747, %v754
    %v757 = vunpack.c.l.s4 1934713408
    %v758 = vunpack.c.0.s8 %v757
    %v759 = vlaneseq
    %v760 = vshrl.u32 %v759, 7
    %v761 = vsub.s32 %v758, %v760
    %v762 = vrot.slane %v748, %v761
    %v763 = vcombine.low %v707, %v723
    %v764 = vcombine.high %v707, %v723
    %v766 = vunpack.c.l.s4 1934713408
    %v767 = vunpack.c.0.s8 %v766
    %v768 = vlaneseq
    %v769 = vshrl.u32 %v768, 7
    %v770 = vsub.s32 %v767, %v769
    %v771 = vrot.slane %v763, %v770
    %v773 = vunpack.c.l.s4 1934713408
    %v774 = vunpack.c.0.s8 %v773
    %v775 = vlaneseq
    %v776 = vshrl.u32 %v775, 7
    %v777 = vsub.s32 %v774, %v776
    %v778 = vrot.slane %v764, %v777
    %v779 = vcombine.low %v714, %v730
    %v780 = vcombine.high %v714, %v730
    %v782 = vunpack.c.l.s4 1934713408
    %v783 = vunpack.c.0.s8 %v782
    %v784 = vlaneseq
    %v785 = vshrl.u32 %v784, 7
    %v786 = vsub.s32 %v783, %v785
    %v787 = vrot.slane %v779, %v786
    %v789 = vunpack.c.l.s4 1934713408
    %v790 = vunpack.c.0.s8 %v789
    %v791 = vlaneseq
    %v792 = vshrl.u32 %v791, 7
    %v793 = vsub.s32 %v790, %v792
    %v794 = vrot.slane %v780, %v793
    %v795 = vcombine.low %v739, %v771
    %v796 = vcombine.high %v739, %v771
    %v797 = vcombine.low %v746, %v778
    %v798 = vcombine.high %v746, %v778
    %v799 = vcombine.low %v755, %v787
    %v800 = vcombine.high %v755, %v787
    %v801 = vcombine.low %v762, %v794
    %v802 = vcombine.high %v762, %v794
    %v803 = vcombine.low %v484, %v490
    %v804 = vcombine.high %v484, %v490
    %v806 = vunpack.c.l.s4 1983009808
    %v807 = vunpack.c.0.s8 %v806
    %v808 = vlaneseq
    %v809 = vshrl.u32 %v808, 7
    %v810 = vsub.s32 %v807, %v809
    %v811 = vrot.slane %v803, %v810
    %v813 = vunpack.c.l.s4 1983009808
    %v814 = vunpack.c.0.s8 %v813
    %v815 = vlaneseq
    %v816 = vshrl.u32 %v815, 7
    %v817 = vsub.s32 %v814, %v816
    %v818 = vrot.slane %v804, %v817
    %v819 = vcombine.low %v487, %v493
    %v820 = vcombine.high %v487, %v493
    %v822 = vunpack.c.l.s4 1983009808
    %v823 = vunpack.c.0.s8 %v822
    %v824 = vlaneseq
    %v825 = vshrl.u32 %v824, 7
    %v826 = vsub.s32 %v823, %v825
    %v827 = vrot.slane %v819, %v826
    %v829 = vunpack.c.l.s4 1983009808
    %v830 = vunpack.c.0.s8 %v829
    %v831 = vlaneseq
    %v832 = vshrl.u32 %v831, 7
    %v833 = vsub.s32 %v830, %v832
    %v834 = vrot.slane %v820, %v833
    %v835 = vcombine.low %v496, %v502
    %v836 = vcombine.high %v496, %v502
    %v838 = vunpack.c.l.s4 1983009808
    %v839 = vunpack.c.0.s8 %v838
    %v840 = vlaneseq
    %v841 = vshrl.u32 %v840, 7
    %v842 = vsub.s32 %v839, %v841
    %v843 = vrot.slane %v835, %v842
    %v845 = vunpack.c.l.s4 1983009808
    %v846 = vunpack.c.0.s8 %v845
    %v847 = vlaneseq
    %v848 = vshrl.u32 %v847, 7
    %v849 = vsub.s32 %v846, %v848
    %v850 = vrot.slane %v836, %v849
    %v851 = vcombine.low %v499, %v505
    %v852 = vcombine.high %v499, %v505
    %v854 = vunpack.c.l.s4 1983009808
    %v855 = vunpack.c.0.s8 %v854
    %v856 = vlaneseq
    %v857 = vshrl.u32 %v856, 7
    %v858 = vsub.s32 %v855, %v857
    %v859 = vrot.slane %v851, %v858
    %v861 = vunpack.c.l.s4 1983009808
    %v862 = vunpack.c.0.s8 %v861
    %v863 = vlaneseq
    %v864 = vshrl.u32 %v863, 7
    %v865 = vsub.s32 %v862, %v864
    %v866 = vrot.slane %v852, %v865
    %v867 = vcombine.low %v811, %v827
    %v868 = vcombine.high %v811, %v827
    %v870 = vunpack.c.l.s4 1934713408
    %v871 = vunpack.c.0.s8 %v870
    %v872 = vlaneseq
    %v873 = vshrl.u32 %v872, 7
    %v874 = vsub.s32 %v871, %v873
    %v875 = vrot.slane %v867, %v874
    %v877 = vunpack.c.l.s4 1934713408
    %v878 = vunpack.c.0.s8 %v877
    %v879 = vlaneseq
    %v880 = vshrl.u32 %v879, 7
    %v881 = vsub.s32 %v878, %v880
    %v882 = vrot.slane %v868, %v881
    %v883 = vcombine.low %v818, %v834
    %v884 = vcombine.high %v818, %v834
    %v886 = vunpack.c.l.s4 1934713408
    %v887 = vunpack.c.0.s8 %v886
    %v888 = vlaneseq
    %v889 = vshrl.u32 %v888, 7
    %v890 = vsub.s32 %v887, %v889
    %v891 = vrot.slane %v883, %v890
    %v893 = vunpack.c.l.s4 1934713408
    %v894 = vunpack.c.0.s8 %v893
    %v895 = vlaneseq
    %v896 = vshrl.u32 %v895, 7
    %v897 = vsub.s32 %v894, %v896
    %v898 = vrot.slane %v884, %v897
    %v899 = vcombine.low %v843, %v859
    %v900 = vcombine.high %v843, %v859
    %v902 = vunpack.c.l.s4 1934713408
    %v903 = vunpack.c.0.s8 %v902
    %v904 = vlaneseq
    %v905 = vshrl.u32 %v904, 7
    %v906 = vsub.s32 %v903, %v905
    %v907 = vrot.slane %v899, %v906
    %v909 = vunpack.c.l.s4 1934713408
    %v910 = vunpack.c.0.s8 %v909
    %v911 = vlaneseq
    %v912 = vshrl.u32 %v911, 7
    %v913 = vsub.s32 %v910, %v912
    %v914 = vrot.slane %v900, %v913
    %v915 = vcombine.low %v850, %v866
    %v916 = vcombine.high %v850, %v866
    %v918 = vunpack.c.l.s4 1934713408
    %v919 = vunpack.c.0.s8 %v918
    %v920 = vlaneseq
    %v921 = vshrl.u32 %v920, 7
    %v922 = vsub.s32 %v919, %v921
    %v923 = vrot.slane %v915, %v922
    %v925 = vunpack.c.l.s4 1934713408
    %v926 = vunpack.c.0.s8 %v925
    %v927 = vlaneseq
    %v928 = vshrl.u32 %v927, 7
    %v929 = vsub.s32 %v926, %v928
    %v930 = vrot.slane %v916, %v929
    %v931 = vcombine.low %v875, %v907
    %v932 = vcombine.high %v875, %v907
    %v933 = vcombine.low %v882, %v914
    %v934 = vcombine.high %v882, %v914
    %v935 = vcombine.low %v891, %v923
    %v936 = vcombine.high %v891, %v923
    %v937 = vcombine.low %v898, %v930
    %v938 = vcombine.high %v898, %v930
    %v939 = vcombine.low %v508, %v514
    %v940 = vcombine.high %v508, %v514
    %v942 = vunpack.c.l.s4 1983009808
    %v943 = vunpack.c.0.s8 %v942
    %v944 = vlaneseq
    %v945 = vshrl.u32 %v944, 7
    %v946 = vsub.s32 %v943, %v945
    %v947 = vrot.slane %v939, %v946
    %v949 = vunpack.c.l.s4 1983009808
    %v950 = vunpack.c.0.s8 %v949
    %v951 = vlaneseq
    %v952 = vshrl.u32 %v951, 7
    %v953 = vsub.s32 %v950, %v952
    %v954 = vrot.slane %v940, %v953
    %v955 = vcombine.low %v511, %v517
    %v956 = vcombine.high %v511, %v517
    %v958 = vunpack.c.l.s4 1983009808
    %v959 = vunpack.c.0.s8 %v958
    %v960 = vlaneseq
    %v961 = vshrl.u32 %v960, 7
    %v962 = vsub.s32 %v959, %v961
    %v963 = vrot.slane %v955, %v962
    %v965 = vunpack.c.l.s4 1983009808
    %v966 = vunpack.c.0.s8 %v965
    %v967 = vlaneseq
    %v968 = vshrl.u32 %v967, 7
    %v969 = vsub.s32 %v966, %v968
    %v970 = vrot.slane %v956, %v969
    %v971 = vcombine.low %v520, %v526
    %v972 = vcombine.high %v520, %v526
    %v974 = vunpack.c.l.s4 1983009808
    %v975 = vunpack.c.0.s8 %v974
    %v976 = vlaneseq
    %v977 = vshrl.u32 %v976, 7
    %v978 = vsub.s32 %v975, %v977
    %v979 = vrot.slane %v971, %v978
    %v981 = vunpack.c.l.s4 1983009808
    %v982 = vunpack.c.0.s8 %v981
    %v983 = vlaneseq
    %v984 = vshrl.u32 %v983, 7
    %v985 = vsub.s32 %v982, %v984
    %v986 = vrot.slane %v972, %v985
    %v987 = vcombine.low %v523, %v529
    %v988 = vcombine.high %v523, %v529
    %v990 = vunpack.c.l.s4 1983009808
    %v991 = vunpack.c.0.s8 %v990
    %v992 = vlaneseq
    %v993 = vshrl.u32 %v992, 7
    %v994 = vsub.s32 %v991, %v993
    %v995 = vrot.slane %v987, %v994
    %v997 = vunpack.c.l.s4 1983009808
    %v998 = vunpack.c.0.s8 %v997
    %v999 = vlaneseq
    %v1000 = vshrl.u32 %v999, 7
    %v1001 = vsub.s32 %v998, %v1000
    %v1002 = vrot.slane %v988, %v1001
    %v1003 = vcombine.low %v947, %v963
    %v1004 = vcombine.high %v947, %v963
    %v1006 = vunpack.c.l.s4 1934713408
    %v1007 = vunpack.c.0.s8 %v1006
    %v1008 = vlaneseq
    %v1009 = vshrl.u32 %v1008, 7
    %v1010 = vsub.s32 %v1007, %v1009
    %v1011 = vrot.slane %v1003, %v1010
    %v1013 = vunpack.c.l.s4 1934713408
    %v1014 = vunpack.c.0.s8 %v1013
    %v1015 = vlaneseq
    %v1016 = vshrl.u32 %v1015, 7
    %v1017 = vsub.s32 %v1014, %v1016
    %v1018 = vrot.slane %v1004, %v1017
    %v1019 = vcombine.low %v954, %v970
    %v1020 = vcombine.high %v954, %v970
    %v1022 = vunpack.c.l.s4 1934713408
    %v1023 = vunpack.c.0.s8 %v1022
    %v1024 = vlaneseq
    %v1025 = vshrl.u32 %v1024, 7
    %v1026 = vsub.s32 %v1023, %v1025
    %v1027 = vrot.slane %v1019, %v1026
    %v1029 = vunpack.c.l.s4 1934713408
    %v1030 = vunpack.c.0.s8 %v1029
    %v1031 = vlaneseq
    %v1032 = vshrl.u32 %v1031, 7
    %v1033 = vsub.s32 %v1030, %v1032
    %v1034 = vrot.slane %v1020, %v1033
    %v1035 = vcombine.low %v979, %v995
    %v1036 = vcombine.high %v979, %v995
    %v1038 = vunpack.c.l.s4 1934713408
    %v1039 = vunpack.c.0.s8 %v1038
    %v1040 = vlaneseq
    %v1041 = vshrl.u32 %v1040, 7
    %v1042 = vsub.s32 %v1039, %v1041
    %v1043 = vrot.slane %v1035, %v1042
    %v1045 = vunpack.c.l.s4 1934713408
    %v1046 = vunpack.c.0.s8 %v1045
    %v1047 = vlaneseq
    %v1048 = vshrl.u32 %v1047, 7
    %v1049 = vsub.s32 %v1046, %v1048
    %v1050 = vrot.slane %v1036, %v1049
    %v1051 = vcombine.low %v986, %v1002
    %v1052 = vcombine.high %v986, %v1002
    %v1054 = vunpack.c.l.s4 1934713408
    %v1055 = vunpack.c.0.s8 %v1054
    %v1056 = vlaneseq
    %v1057 = vshrl.u32 %v1056, 7
    %v1058 = vsub.s32 %v1055, %v1057
    %v1059 = vrot.slane %v1051, %v1058
    %v1061 = vunpack.c.l.s4 1934713408
    %v1062 = vunpack.c.0.s8 %v1061
    %v1063 = vlaneseq
    %v1064 = vshrl.u32 %v1063, 7
    %v1065 = vsub.s32 %v1062, %v1064
    %v1066 = vrot.slane %v1052, %v1065
    %v1067 = vcombine.low %v1011, %v1043
    %v1068 = vcombine.high %v1011, %v1043
    %v1069 = vcombine.low %v1018, %v1050
    %v1070 = vcombine.high %v1018, %v1050
    %v1071 = vcombine.low %v1027, %v1059
    %v1072 = vcombine.high %v1027, %v1059
    %v1073 = vcombine.low %v1034, %v1066
    %v1074 = vcombine.high %v1034, %v1066
    %v1075 = vcombine.low %v485, %v491
    %v1076 = vcombine.high %v485, %v491
    %v1078 = vunpack.c.l.s4 1983009808
    %v1079 = vunpack.c.0.s8 %v1078
    %v1080 = vlaneseq
    %v1081 = vshrl.u32 %v1080, 7
    %v1082 = vsub.s32 %v1079, %v1081
    %v1083 = vrot.slane %v1075, %v1082
    %v1085 = vunpack.c.l.s4 1983009808
    %v1086 = vunpack.c.0.s8 %v1085
    %v1087 = vlaneseq
    %v1088 = vshrl.u32 %v1087, 7
    %v1089 = vsub.s32 %v1086, %v1088
    %v1090 = vrot.slane %v1076, %v1089
    %v1091 = vcombine.low %v488, %v494
    %v1092 = vcombine.high %v488, %v494
    %v1094 = vunpack.c.l.s4 1983009808
    %v1095 = vunpack.c.0.s8 %v1094
    %v1096 = vlaneseq
    %v1097 = vshrl.u32 %v1096, 7
    %v1098 = vsub.s32 %v1095, %v1097
    %v1099 = vrot.slane %v1091, %v1098
    %v1101 = vunpack.c.l.s4 1983009808
    %v1102 = vunpack.c.0.s8 %v1101
    %v1103 = vlaneseq
    %v1104 = vshrl.u32 %v1103, 7
    %v1105 = vsub.s32 %v1102, %v1104
    %v1106 = vrot.slane %v1092, %v1105
    %v1107 = vcombine.low %v497, %v503
    %v1108 = vcombine.high %v497, %v503
    %v1110 = vunpack.c.l.s4 1983009808
    %v1111 = vunpack.c.0.s8 %v1110
    %v1112 = vlaneseq
    %v1113 = vshrl.u32 %v1112, 7
    %v1114 = vsub.s32 %v1111, %v1113
    %v1115 = vrot.slane %v1107, %v1114
    %v1117 = vunpack.c.l.s4 1983009808
    %v1118 = vunpack.c.0.s8 %v1117
    %v1119 = vlaneseq
    %v1120 = vshrl.u32 %v1119, 7
    %v1121 = vsub.s32 %v1118, %v1120
    %v1122 = vrot.slane %v1108, %v1121
    %v1123 = vcombine.low %v500, %v506
    %v1124 = vcombine.high %v500, %v506
    %v1126 = vunpack.c.l.s4 1983009808
    %v1127 = vunpack.c.0.s8 %v1126
    %v1128 = vlaneseq
    %v1129 = vshrl.u32 %v1128, 7
    %v1130 = vsub.s32 %v1127, %v1129
    %v1131 = vrot.slane %v1123, %v1130
    %v1133 = vunpack.c.l.s4 1983009808
    %v1134 = vunpack.c.0.s8 %v1133
    %v1135 = vlaneseq
    %v1136 = vshrl.u32 %v1135, 7
    %v1137 = vsub.s32 %v1134, %v1136
    %v1138 = vrot.slane %v1124, %v1137
    %v1139 = vcombine.low %v1083, %v1099
    %v1140 = vcombine.high %v1083, %v1099
    %v1142 = vunpack.c.l.s4 1934713408
    %v1143 = vunpack.c.0.s8 %v1142
    %v1144 = vlaneseq
    %v1145 = vshrl.u32 %v1144, 7
    %v1146 = vsub.s32 %v1143, %v1145
    %v1147 = vrot.slane %v1139, %v1146
    %v1149 = vunpack.c.l.s4 1934713408
    %v1150 = vunpack.c.0.s8 %v1149
    %v1151 = vlaneseq
    %v1152 = vshrl.u32 %v1151, 7
    %v1153 = vsub.s32 %v1150, %v1152
    %v1154 = vrot.slane %v1140, %v1153
    %v1155 = vcombine.low %v1090, %v1106
    %v1156 = vcombine.high %v1090, %v1106
    %v1158 = vunpack.c.l.s4 1934713408
    %v1159 = vunpack.c.0.s8 %v1158
    %v1160 = vlaneseq
    %v1161 = vshrl.u32 %v1160, 7
    %v1162 = vsub.s32 %v1159, %v1161
    %v1163 = vrot.slane %v1155, %v1162
    %v1165 = vunpack.c.l.s4 1934713408
    %v1166 = vunpack.c.0.s8 %v1165
    %v1167 = vlaneseq
    %v1168 = vshrl.u32 %v1167, 7
    %v1169 = vsub.s32 %v1166, %v1168
    %v1170 = vrot.slane %v1156, %v1169
    %v1171 = vcombine.low %v1115, %v1131
    %v1172 = vcombine.high %v1115, %v1131
    %v1174 = vunpack.c.l.s4 1934713408
    %v1175 = vunpack.c.0.s8 %v1174
    %v1176 = vlaneseq
    %v1177 = vshrl.u32 %v1176, 7
    %v1178 = vsub.s32 %v1175, %v1177
    %v1179 = vrot.slane %v1171, %v1178
    %v1181 = vunpack.c.l.s4 1934713408
    %v1182 = vunpack.c.0.s8 %v1181
    %v1183 = vlaneseq
    %v1184 = vshrl.u32 %v1183, 7
    %v1185 = vsub.s32 %v1182, %v1184
    %v1186 = vrot.slane %v1172, %v1185
    %v1187 = vcombine.low %v1122, %v1138
    %v1188 = vcombine.high %v1122, %v1138
    %v1190 = vunpack.c.l.s4 1934713408
    %v1191 = vunpack.c.0.s8 %v1190
    %v1192 = vlaneseq
    %v1193 = vshrl.u32 %v1192, 7
    %v1194 = vsub.s32 %v1191, %v1193
    %v1195 = vrot.slane %v1187, %v1194
    %v1197 = vunpack.c.l.s4 1934713408
    %v1198 = vunpack.c.0.s8 %v1197
    %v1199 = vlaneseq
    %v1200 = vshrl.u32 %v1199, 7
    %v1201 = vsub.s32 %v1198, %v1200
    %v1202 = vrot.slane %v1188, %v1201
    %v1203 = vcombine.low %v1147, %v1179
    %v1204 = vcombine.high %v1147, %v1179
    %v1205 = vcombine.low %v1154, %v1186
    %v1206 = vcombine.high %v1154, %v1186
    %v1207 = vcombine.low %v1163, %v1195
    %v1208 = vcombine.high %v1163, %v1195
    %v1209 = vcombine.low %v1170, %v1202
    %v1210 = vcombine.high %v1170, %v1202
    %v1211 = vcombine.low %v509, %v515
    %v1212 = vcombine.high %v509, %v515
    %v1214 = vunpack.c.l.s4 1983009808
    %v1215 = vunpack.c.0.s8 %v1214
    %v1216 = vlaneseq
    %v1217 = vshrl.u32 %v1216, 7
    %v1218 = vsub.s32 %v1215, %v1217
    %v1219 = vrot.slane %v1211, %v1218
    %v1221 = vunpack.c.l.s4 1983009808
    %v1222 = vunpack.c.0.s8 %v1221
    %v1223 = vlaneseq
    %v1224 = vshrl.u32 %v1223, 7
    %v1225 = vsub.s32 %v1222, %v1224
    %v1226 = vrot.slane %v1212, %v1225
    %v1227 = vcombine.low %v512, %v518
    %v1228 = vcombine.high %v512, %v518
    %v1230 = vunpack.c.l.s4 1983009808
    %v1231 = vunpack.c.0.s8 %v1230
    %v1232 = vlaneseq
    %v1233 = vshrl.u32 %v1232, 7
    %v1234 = vsub.s32 %v1231, %v1233
    %v1235 = vrot.slane %v1227, %v1234
    %v1237 = vunpack.c.l.s4 1983009808
    %v1238 = vunpack.c.0.s8 %v1237
    %v1239 = vlaneseq
    %v1240 = vshrl.u32 %v1239, 7
    %v1241 = vsub.s32 %v1238, %v1240
    %v1242 = vrot.slane %v1228, %v1241
    %v1243 = vcombine.low %v521, %v527
    %v1244 = vcombine.high %v521, %v527
    %v1246 = vunpack.c.l.s4 1983009808
    %v1247 = vunpack.c.0.s8 %v1246
    %v1248 = vlaneseq
    %v1249 = vshrl.u32 %v1248, 7
    %v1250 = vsub.s32 %v1247, %v1249
    %v1251 = vrot.slane %v1243, %v1250
    %v1253 = vunpack.c.l.s4 1983009808
    %v1254 = vunpack.c.0.s8 %v1253
    %v1255 = vlaneseq
    %v1256 = vshrl.u32 %v1255, 7
    %v1257 = vsub.s32 %v1254, %v1256
    %v1258 = vrot.slane %v1244, %v1257
    %v1259 = vcombine.low %v524, %v530
    %v1260 = vcombine.high %v524, %v530
    %v1262 = vunpack.c.l.s4 1983009808
    %v1263 = vunpack.c.0.s8 %v1262
    %v1264 = vlaneseq
    %v1265 = vshrl.u32 %v1264, 7
    %v1266 = vsub.s32 %v1263, %v1265
    %v1267 = vrot.slane %v1259, %v1266
    %v1269 = vunpack.c.l.s4 1983009808
    %v1270 = vunpack.c.0.s8 %v1269
    %v1271 = vlaneseq
    %v1272 = vshrl.u32 %v1271, 7
    %v1273 = vsub.s32 %v1270, %v1272
    %v1274 = vrot.slane %v1260, %v1273
    %v1275 = vcombine.low %v1219, %v1235
    %v1276 = vcombine.high %v1219, %v1235
    %v1278 = vunpack.c.l.s4 1934713408
    %v1279 = vunpack.c.0.s8 %v1278
    %v1280 = vlaneseq
    %v1281 = vshrl.u32 %v1280, 7
    %v1282 = vsub.s32 %v1279, %v1281
    %v1283 = vrot.slane %v1275, %v1282
    %v1285 = vunpack.c.l.s4 1934713408
    %v1286 = vunpack.c.0.s8 %v1285
    %v1287 = vlaneseq
    %v1288 = vshrl.u32 %v1287, 7
    %v1289 = vsub.s32 %v1286, %v1288
    %v1290 = vrot.slane %v1276, %v1289
    %v1291 = vcombine.low %v1226, %v1242
    %v1292 = vcombine.high %v1226, %v1242
    %v1294 = vunpack.c.l.s4 1934713408
    %v1295 = vunpack.c.0.s8 %v1294
    %v1296 = vlaneseq
    %v1297 = vshrl.u32 %v1296, 7
    %v1298 = vsub.s32 %v1295, %v1297
    %v1299 = vrot.slane %v1291, %v1298
    %v1301 = vunpack.c.l.s4 1934713408
    %v1302 = vunpack.c.0.s8 %v1301
    %v1303 = vlaneseq
    %v1304 = vshrl.u32 %v1303, 7
    %v1305 = vsub.s32 %v1302, %v1304
    %v1306 = vrot.slane %v1292, %v1305
    %v1307 = vcombine.low %v1251, %v1267
    %v1308 = vcombine.high %v1251, %v1267
    %v1310 = vunpack.c.l.s4 1934713408
    %v1311 = vunpack.c.0.s8 %v1310
    %v1312 = vlaneseq
    %v1313 = vshrl.u32 %v1312, 7
    %v1314 = vsub.s32 %v1311, %v1313
    %v1315 = vrot.slane %v1307, %v1314
    %v1317 = vunpack.c.l.s4 1934713408
    %v1318 = vunpack.c.0.s8 %v1317
    %v1319 = vlaneseq
    %v1320 = vshrl.u32 %v1319, 7
    %v1321 = vsub.s32 %v1318, %v1320
    %v1322 = vrot.slane %v1308, %v1321
    %v1323 = vcombine.low %v1258, %v1274
    %v1324 = vcombine.high %v1258, %v1274
    %v1326 = vunpack.c.l.s4 1934713408
    %v1327 = vunpack.c.0.s8 %v1326
    %v1328 = vlaneseq
    %v1329 = vshrl.u32 %v1328, 7
    %v1330 = vsub.s32 %v1327, %v1329
    %v1331 = vrot.slane %v1323, %v1330
    %v1333 = vunpack.c.l.s4 1934713408
    %v1334 = vunpack.c.0.s8 %v1333
    %v1335 = vlaneseq
    %v1336 = vshrl.u32 %v1335, 7
    %v1337 = vsub.s32 %v1334, %v1336
    %v1338 = vrot.slane %v1324, %v1337
    %v1339 = vcombine.low %v1283, %v1315
    %v1340 = vcombine.high %v1283, %v1315
    %v1341 = vcombine.low %v1290, %v1322
    %v1342 = vcombine.high %v1290, %v1322
    %v1343 = vcombine.low %v1299, %v1331
    %v1344 = vcombine.high %v1299, %v1331
    %v1345 = vcombine.low %v1306, %v1338
    %v1346 = vcombine.high %v1306, %v1338
    %1349 = vrot.lane.b32.xlu0 %v660, 32
    %v1350 = vpop.permute.xlu0 %1349
    %1351 = vrot.lane.b32.xlu0 %v796, 32
    %v1352 = vpop.permute.xlu0 %1351
    %1357 = vrot.lane.b32.xlu0 %v661, 64
    %v1358 = vpop.permute.xlu0 %1357
    %1359 = vrot.lane.b32.xlu0 %v797, 64
    %v1360 = vpop.permute.xlu0 %1359
    %1365 = vrot.lane.b32.xlu0 %v662, 96
    %v1366 = vpop.permute.xlu0 %1365
    %1367 = vrot.lane.b32.xlu0 %v798, 96
    %v1368 = vpop.permute.xlu0 %1367
    %1373 = vrot.lane.b32.xlu0 %v664, 32
    %v1374 = vpop.permute.xlu0 %1373
    %1375 = vrot.lane.b32.xlu0 %v800, 32
    %v1376 = vpop.permute.xlu0 %1375
    %1381 = vrot.lane.b32.xlu0 %v665, 64
    %v1382 = vpop.permute.xlu0 %1381
    %1383 = vrot.lane.b32.xlu0 %v801, 64
    %v1384 = vpop.permute.xlu0 %1383
    %1389 = vrot.lane.b32.xlu0 %v666, 96
    %v1390 = vpop.permute.xlu0 %1389
    %1391 = vrot.lane.b32.xlu0 %v802, 96
    %v1392 = vpop.permute.xlu0 %1391
    %1397 = vrot.lane.b32.xlu0 %v932, 32
    %v1398 = vpop.permute.xlu0 %1397
    %1399 = vrot.lane.b32.xlu0 %v1068, 32
    %v1400 = vpop.permute.xlu0 %1399
    %1405 = vrot.lane.b32.xlu0 %v933, 64
    %v1406 = vpop.permute.xlu0 %1405
    %1407 = vrot.lane.b32.xlu0 %v1069, 64
    %v1408 = vpop.permute.xlu0 %1407
    %1413 = vrot.lane.b32.xlu0 %v934, 96
    %v1414 = vpop.permute.xlu0 %1413
    %1415 = vrot.lane.b32.xlu0 %v1070, 96
    %v1416 = vpop.permute.xlu0 %1415
    %1421 = vrot.lane.b32.xlu0 %v936, 32
    %v1422 = vpop.permute.xlu0 %1421
    %1423 = vrot.lane.b32.xlu0 %v1072, 32
    %v1424 = vpop.permute.xlu0 %1423
    %1429 = vrot.lane.b32.xlu0 %v937, 64
    %v1430 = vpop.permute.xlu0 %1429
    %1431 = vrot.lane.b32.xlu0 %v1073, 64
    %v1432 = vpop.permute.xlu0 %1431
    %1437 = vrot.lane.b32.xlu0 %v938, 96
    %v1438 = vpop.permute.xlu0 %1437
    %1439 = vrot.lane.b32.xlu0 %v1074, 96
    %v1440 = vpop.permute.xlu0 %1439
    %1445 = vrot.lane.b32.xlu0 %v1204, 32
    %v1446 = vpop.permute.xlu0 %1445
    %1447 = vrot.lane.b32.xlu0 %v1340, 32
    %v1448 = vpop.permute.xlu0 %1447
    %1453 = vrot.lane.b32.xlu0 %v1205, 64
    %v1454 = vpop.permute.xlu0 %1453
    %1455 = vrot.lane.b32.xlu0 %v1341, 64
    %v1456 = vpop.permute.xlu0 %1455
    %1461 = vrot.lane.b32.xlu0 %v1206, 96
    %v1462 = vpop.permute.xlu0 %1461
    %1463 = vrot.lane.b32.xlu0 %v1342, 96
    %v1464 = vpop.permute.xlu0 %1463
    %1469 = vrot.lane.b32.xlu0 %v1208, 32
    %v1470 = vpop.permute.xlu0 %1469
    %1471 = vrot.lane.b32.xlu0 %v1344, 32
    %v1472 = vpop.permute.xlu0 %1471
    %1477 = vrot.lane.b32.xlu0 %v1209, 64
    %v1478 = vpop.permute.xlu0 %1477
    %1479 = vrot.lane.b32.xlu0 %v1345, 64
    %v1480 = vpop.permute.xlu0 %1479
    %1485 = vrot.lane.b32.xlu0 %v1210, 96
    %v1486 = vpop.permute.xlu0 %1485
    %1487 = vrot.lane.b32.xlu0 %v1346, 96
    %v1488 = vpop.permute.xlu0 %1487
    %vm1491 = vcmask 261120
    %v1492 = vsel %vm1491, %v659, %v1350
    %v1493 = vsel %vm1491, %v795, %v1352
    %vm1494 = vcmask 523264
    %v1495 = vsel %vm1494, %v1492, %v1358
    %v1496 = vsel %vm1494, %v1493, %v1360
    %vm1497 = vcmask 785408
    %v1498 = vsel %vm1497, %v1495, %v1366
    %v1499 = vsel %vm1497, %v1496, %v1368
    %v1500 = vsel %vm1491, %v663, %v1374
    %v1501 = vsel %vm1491, %v799, %v1376
    %v1502 = vsel %vm1494, %v1500, %v1382
    %v1503 = vsel %vm1494, %v1501, %v1384
    %v1504 = vsel %vm1497, %v1502, %v1390
    %v1505 = vsel %vm1497, %v1503, %v1392
    %v1506 = vsel %vm1491, %v931, %v1398
    %v1507 = vsel %vm1491, %v1067, %v1400
    %v1508 = vsel %vm1494, %v1506, %v1406
    %v1509 = vsel %vm1494, %v1507, %v1408
    %v1510 = vsel %vm1497, %v1508, %v1414
    %v1511 = vsel %vm1497, %v1509, %v1416
    %v1512 = vsel %vm1491, %v935, %v1422
    %v1513 = vsel %vm1491, %v1071, %v1424
    %v1514 = vsel %vm1494, %v1512, %v1430
    %v1515 = vsel %vm1494, %v1513, %v1432
    %v1516 = vsel %vm1497, %v1514, %v1438
    %v1517 = vsel %vm1497, %v1515, %v1440
    %v1518 = vsel %vm1491, %v1203, %v1446
    %v1519 = vsel %vm1491, %v1339, %v1448
    %v1520 = vsel %vm1494, %v1518, %v1454
    %v1521 = vsel %vm1494, %v1519, %v1456
    %v1522 = vsel %vm1497, %v1520, %v1462
    %v1523 = vsel %vm1497, %v1521, %v1464
    %v1524 = vsel %vm1491, %v1207, %v1470
    %v1525 = vsel %vm1491, %v1343, %v1472
    %v1526 = vsel %vm1494, %v1524, %v1478
    %v1527 = vsel %vm1494, %v1525, %v1480
    %v1528 = vsel %vm1497, %v1526, %v1486
    %v1529 = vsel %vm1497, %v1527, %v1488
    %v1530 = vld [vmem:[#allocation7] sm:$0xff]
    %v1531 = vld [vmem:[#allocation7 + $0x8] sm:$0xff]
    %v1532 = vld [vmem:[#allocation7 + $0x10] sm:$0xff]
    %v1533 = vld [vmem:[#allocation7 + $0x18] sm:$0xff]
    %v1534 = vld [vmem:[#allocation7 + $0x20] sm:$0xff]
    %v1535 = vld [vmem:[#allocation7 + $0x28] sm:$0xff]
    %v1536 = vld [vmem:[#allocation7 + $0x30] sm:$0xff]
    %v1537 = vld [vmem:[#allocation7 + $0x38] sm:$0xff]
    %v1538 = vld [vmem:[#allocation7 + $0x40] sm:$0xff]
    %v1539 = vld [vmem:[#allocation7 + $0x48] sm:$0xff]
    %v1540 = vld [vmem:[#allocation7 + $0x50] sm:$0xff]
    %v1541 = vld [vmem:[#allocation7 + $0x58] sm:$0xff]
    %v1542 = vld [vmem:[#allocation7 + $0x60] sm:$0xff]
    %v1543 = vld [vmem:[#allocation7 + $0x68] sm:$0xff]
    %v1544 = vld [vmem:[#allocation7 + $0x70] sm:$0xff]
    %v1545 = vld [vmem:[#allocation7 + $0x78] sm:$0xff]
    %v1546 = vld [vmem:[#allocation7 + $0x80] sm:$0xff]
    %v1547 = vld [vmem:[#allocation7 + $0x88] sm:$0xff]
    %v1548 = vld [vmem:[#allocation7 + $0x90] sm:$0xff]
    %v1549 = vld [vmem:[#allocation7 + $0x98] sm:$0xff]
    %v1550 = vld [vmem:[#allocation7 + $0xa0] sm:$0xff]
    %v1551 = vld [vmem:[#allocation7 + $0xa8] sm:$0xff]
    %v1552 = vld [vmem:[#allocation7 + $0xb0] sm:$0xff]
    %v1553 = vld [vmem:[#allocation7 + $0xb8] sm:$0xff]
    %v1554 = vld [vmem:[#allocation7 + $0xc0] sm:$0xff]
    %v1555 = vld [vmem:[#allocation7 + $0xc8] sm:$0xff]
    %v1556 = vld [vmem:[#allocation7 + $0xd0] sm:$0xff]
    %v1557 = vld [vmem:[#allocation7 + $0xd8] sm:$0xff]
    %v1558 = vld [vmem:[#allocation7 + $0xe0] sm:$0xff]
    %v1559 = vld [vmem:[#allocation7 + $0xe8] sm:$0xff]
    %v1560 = vld [vmem:[#allocation7 + $0xf0] sm:$0xff]
    %v1561 = vld [vmem:[#allocation7 + $0xf8] sm:$0xff]
    %v1562 = vld [vmem:[#allocation7 + $0x100] sm:$0xff]
    %v1563 = vld [vmem:[#allocation7 + $0x108] sm:$0xff]
    %v1564 = vld [vmem:[#allocation7 + $0x110] sm:$0xff]
    %v1565 = vld [vmem:[#allocation7 + $0x118] sm:$0xff]
    %v1566 = vld [vmem:[#allocation7 + $0x120] sm:$0xff]
    %v1567 = vld [vmem:[#allocation7 + $0x128] sm:$0xff]
    %v1568 = vld [vmem:[#allocation7 + $0x130] sm:$0xff]
    %v1569 = vld [vmem:[#allocation7 + $0x138] sm:$0xff]
    %v1570 = vld [vmem:[#allocation7 + $0x140] sm:$0xff]
    %v1571 = vld [vmem:[#allocation7 + $0x148] sm:$0xff]
    %v1572 = vld [vmem:[#allocation7 + $0x150] sm:$0xff]
    %v1573 = vld [vmem:[#allocation7 + $0x158] sm:$0xff]
    %v1574 = vld [vmem:[#allocation7 + $0x160] sm:$0xff]
    %v1575 = vld [vmem:[#allocation7 + $0x168] sm:$0xff]
    %v1576 = vld [vmem:[#allocation7 + $0x170] sm:$0xff]
    %v1577 = vld [vmem:[#allocation7 + $0x178] sm:$0xff]
    %v1578 = vld [vmem:[#allocation7 + $0x180] sm:$0xff]
    %v1579 = vld [vmem:[#allocation7 + $0x188] sm:$0xff]
    %v1580 = vld [vmem:[#allocation7 + $0x190] sm:$0xff]
    %v1581 = vld [vmem:[#allocation7 + $0x198] sm:$0xff]
    %v1582 = vld [vmem:[#allocation7 + $0x1a0] sm:$0xff]
    %v1583 = vld [vmem:[#allocation7 + $0x1a8] sm:$0xff]
    %v1584 = vld [vmem:[#allocation7 + $0x1b0] sm:$0xff]
    %v1585 = vld [vmem:[#allocation7 + $0x1b8] sm:$0xff]
    %v1586 = vld [vmem:[#allocation7 + $0x1c0] sm:$0xff]
    %v1587 = vld [vmem:[#allocation7 + $0x1c8] sm:$0xff]
    %v1588 = vld [vmem:[#allocation7 + $0x1d0] sm:$0xff]
    %v1589 = vld [vmem:[#allocation7 + $0x1d8] sm:$0xff]
    %v1590 = vld [vmem:[#allocation7 + $0x1e0] sm:$0xff]
    %v1591 = vld [vmem:[#allocation7 + $0x1e8] sm:$0xff]
    %v1592 = vld [vmem:[#allocation7 + $0x1f0] sm:$0xff]
    %v1593 = vld [vmem:[#allocation7 + $0x1f8] sm:$0xff]
    %v1594 = vld [vmem:[#allocation7 + $0x200] sm:$0xff]
    %v1595 = vld [vmem:[#allocation7 + $0x208] sm:$0xff]
    %v1596 = vld [vmem:[#allocation7 + $0x210] sm:$0xff]
    %v1597 = vld [vmem:[#allocation7 + $0x218] sm:$0xff]
    %v1598 = vld [vmem:[#allocation7 + $0x220] sm:$0xff]
    %v1599 = vld [vmem:[#allocation7 + $0x228] sm:$0xff]
    %v1600 = vld [vmem:[#allocation7 + $0x230] sm:$0xff]
    %v1601 = vld [vmem:[#allocation7 + $0x238] sm:$0xff]
    %v1602 = vld [vmem:[#allocation7 + $0x240] sm:$0xff]
    %v1603 = vld [vmem:[#allocation7 + $0x248] sm:$0xff]
    %v1604 = vld [vmem:[#allocation7 + $0x250] sm:$0xff]
    %v1605 = vld [vmem:[#allocation7 + $0x258] sm:$0xff]
    %v1606 = vld [vmem:[#allocation7 + $0x260] sm:$0xff]
    %v1607 = vld [vmem:[#allocation7 + $0x268] sm:$0xff]
    %v1608 = vld [vmem:[#allocation7 + $0x270] sm:$0xff]
    %v1609 = vld [vmem:[#allocation7 + $0x278] sm:$0xff]
    %v1610 = vld [vmem:[#allocation7 + $0x280] sm:$0xff]
    %v1611 = vld [vmem:[#allocation7 + $0x288] sm:$0xff]
    %v1612 = vld [vmem:[#allocation7 + $0x290] sm:$0xff]
    %v1613 = vld [vmem:[#allocation7 + $0x298] sm:$0xff]
    %v1614 = vld [vmem:[#allocation7 + $0x2a0] sm:$0xff]
    %v1615 = vld [vmem:[#allocation7 + $0x2a8] sm:$0xff]
    %v1616 = vld [vmem:[#allocation7 + $0x2b0] sm:$0xff]
    %v1617 = vld [vmem:[#allocation7 + $0x2b8] sm:$0xff]
    %v1618 = vld [vmem:[#allocation7 + $0x2c0] sm:$0xff]
    %v1619 = vld [vmem:[#allocation7 + $0x2c8] sm:$0xff]
    %v1620 = vld [vmem:[#allocation7 + $0x2d0] sm:$0xff]
    %v1621 = vld [vmem:[#allocation7 + $0x2d8] sm:$0xff]
    %v1622 = vld [vmem:[#allocation7 + $0x2e0] sm:$0xff]
    %v1623 = vld [vmem:[#allocation7 + $0x2e8] sm:$0xff]
    %v1624 = vld [vmem:[#allocation7 + $0x2f0] sm:$0xff]
    %v1625 = vld [vmem:[#allocation7 + $0x2f8] sm:$0xff]
    %v1626 = vld [vmem:[%s3] sm:$0x1]
    %v1628 = vlaneseq
    %v1629 = vshrl.u32 %v1628, 7
    %v1630 = vsub.s32 0, %v1629
    %v1631 = vrot.slane %v1626, %v1630
    %1633 = vmatprep.subr.mxu0 0.0
    %1634 = vmatpush1.msra.mxu0 %v1530
    %1635 = vmatprep.subr.mxu0 0.0
    %1636 = vmatpush1.msra.mxu0 %v1531
    %1637 = vmatprep.subr.mxu0 0.0
    %1638 = vmatpush1.msra.mxu0 %v1532
    %1639 = vmatprep.subr.mxu0 0.0
    %1640 = vmatpush1.msra.mxu0 %v1533
    %1641 = vmatprep.subr.mxu0 0.0
    %1642 = vmatpush1.msra.mxu0 %v1534
    %1643 = vmatprep.subr.mxu0 0.0
    %1644 = vmatpush1.msra.mxu0 %v1535
    %1645 = vmatprep.subr.mxu0 0.0
    %1646 = vmatpush1.msra.mxu0 %v1536
    %1647 = vmatprep.subr.mxu0 0.0
    %1648 = vmatpush1.msra.mxu0 %v1537
    %1649 = vmatprep.subr.mxu0 0.0
    %1650 = vmatpush1.msra.mxu0 %v1538
    %1651 = vmatprep.subr.mxu0 0.0
    %1652 = vmatpush1.msra.mxu0 %v1539
    %1653 = vmatprep.subr.mxu0 0.0
    %1654 = vmatpush1.msra.mxu0 %v1540
    %1655 = vmatprep.subr.mxu0 0.0
    %1656 = vmatpush1.msra.mxu0 %v1541
    %1657 = vmatprep.subr.mxu0 0.0
    %1658 = vmatpush1.msra.mxu0 %v1542
    %1659 = vmatprep.subr.mxu0 0.0
    %1660 = vmatpush1.msra.mxu0 %v1543
    %1661 = vmatprep.subr.mxu0 0.0
    %1662 = vmatpush1.msra.mxu0 %v1544
    %1663 = vmatprep.subr.mxu0 0.0
    %1664 = vmatpush1.msra.mxu0 %v1545
    %1665 = vmatprep.subr.mxu0 0.0
    %1666 = vmatpush1.msra.mxu0 %v1546
    %1667 = vmatprep.subr.mxu0 0.0
    %1668 = vmatpush1.msra.mxu0 %v1547
    %1669 = vmatprep.subr.mxu0 0.0
    %1670 = vmatpush1.msra.mxu0 %v1548
    %1671 = vmatprep.subr.mxu0 0.0
    %1672 = vmatpush1.msra.mxu0 %v1549
    %1673 = vmatprep.subr.mxu0 0.0
    %1674 = vmatpush1.msra.mxu0 %v1550
    %1675 = vmatprep.subr.mxu0 0.0
    %1676 = vmatpush1.msra.mxu0 %v1551
    %1677 = vmatprep.subr.mxu0 0.0
    %1678 = vmatpush1.msra.mxu0 %v1552
    %1679 = vmatprep.subr.mxu0 0.0
    %1680 = vmatpush1.msra.mxu0 %v1553
    %1681 = vmatprep.subr.mxu0 0.0
    %1682 = vmatpush1.msra.mxu0 %v1554
    %1683 = vmatprep.subr.mxu0 0.0
    %1684 = vmatpush1.msra.mxu0 %v1555
    %1685 = vmatprep.subr.mxu0 0.0
    %1686 = vmatpush1.msra.mxu0 %v1556
    %1687 = vmatprep.subr.mxu0 0.0
    %1688 = vmatpush1.msra.mxu0 %v1557
    %1689 = vmatprep.subr.mxu0 0.0
    %1690 = vmatpush1.msra.mxu0 %v1558
    %1691 = vmatprep.subr.mxu0 0.0
    %1692 = vmatpush1.msra.mxu0 %v1559
    %1693 = vmatprep.subr.mxu0 0.0
    %1694 = vmatpush1.msra.mxu0 %v1560
    %1695 = vmatprep.subr.mxu0 0.0
    %1696 = vmatpush1.msra.mxu0 %v1561
    %1697 = vmatprep.mubr.f32.mxu0 %v1504
    %1698 = vmatmul.mubr.f32.gmra.mrb[0].mxu0 %v1498
    %v1699 = vpop.f32.mrb[0].mxu0
    %v1700 = vadd.f32 %v1631, %v1699
    %v1701 = vpop.f32.mrb[0].mxu0
    %1702 = vmatprep.mubr.f32.mxu0 %v1505
    %1703 = vmatmul.mubr.f32.gmra.mrb[0].mxu0 %v1499
    %v1704 = vpop.f32.mrb[0].mxu0
    %v1705 = vadd.f32 %v1631, %v1704
    %v1706 = vpop.f32.mrb[0].mxu0
    %1707 = vdwg.mxu0
    %1708 = vmatprep.subr.mxu0 0.0
    %1709 = vmatpush1.msra.mxu0 %v1562
    %1710 = vmatprep.subr.mxu0 0.0
    %1711 = vmatpush1.msra.mxu0 %v1563
    %1712 = vmatprep.subr.mxu0 0.0
    %1713 = vmatpush1.msra.mxu0 %v1564
    %1714 = vmatprep.subr.mxu0 0.0
    %1715 = vmatpush1.msra.mxu0 %v1565
    %1716 = vmatprep.subr.mxu0 0.0
    %1717 = vmatpush1.msra.mxu0 %v1566
    %1718 = vmatprep.subr.mxu0 0.0
    %1719 = vmatpush1.msra.mxu0 %v1567
    %1720 = vmatprep.subr.mxu0 0.0
    %1721 = vmatpush1.msra.mxu0 %v1568
    %1722 = vmatprep.subr.mxu0 0.0
    %1723 = vmatpush1.msra.mxu0 %v1569
    %1724 = vmatprep.subr.mxu0 0.0
    %1725 = vmatpush1.msra.mxu0 %v1570
    %1726 = vmatprep.subr.mxu0 0.0
    %1727 = vmatpush1.msra.mxu0 %v1571
    %1728 = vmatprep.subr.mxu0 0.0
    %1729 = vmatpush1.msra.mxu0 %v1572
    %1730 = vmatprep.subr.mxu0 0.0
    %1731 = vmatpush1.msra.mxu0 %v1573
    %1732 = vmatprep.subr.mxu0 0.0
    %1733 = vmatpush1.msra.mxu0 %v1574
    %1734 = vmatprep.subr.mxu0 0.0
    %1735 = vmatpush1.msra.mxu0 %v1575
    %1736 = vmatprep.subr.mxu0 0.0
    %1737 = vmatpush1.msra.mxu0 %v1576
    %1738 = vmatprep.subr.mxu0 0.0
    %1739 = vmatpush1.msra.mxu0 %v1577
    %1740 = vmatprep.subr.mxu0 0.0
    %1741 = vmatpush1.msra.mxu0 %v1578
    %1742 = vmatprep.subr.mxu0 0.0
    %1743 = vmatpush1.msra.mxu0 %v1579
    %1744 = vmatprep.subr.mxu0 0.0
    %1745 = vmatpush1.msra.mxu0 %v1580
    %1746 = vmatprep.subr.mxu0 0.0
    %1747 = vmatpush1.msra.mxu0 %v1581
    %1748 = vmatprep.subr.mxu0 0.0
    %1749 = vmatpush1.msra.mxu0 %v1582
    %1750 = vmatprep.subr.mxu0 0.0
    %1751 = vmatpush1.msra.mxu0 %v1583
    %1752 = vmatprep.subr.mxu0 0.0
    %1753 = vmatpush1.msra.mxu0 %v1584
    %1754 = vmatprep.subr.mxu0 0.0
    %1755 = vmatpush1.msra.mxu0 %v1585
    %1756 = vmatprep.subr.mxu0 0.0
    %1757 = vmatpush1.msra.mxu0 %v1586
    %1758 = vmatprep.subr.mxu0 0.0
    %1759 = vmatpush1.msra.mxu0 %v1587
    %1760 = vmatprep.subr.mxu0 0.0
    %1761 = vmatpush1.msra.mxu0 %v1588
    %1762 = vmatprep.subr.mxu0 0.0
    %1763 = vmatpush1.msra.mxu0 %v1589
    %1764 = vmatprep.subr.mxu0 0.0
    %1765 = vmatpush1.msra.mxu0 %v1590
    %1766 = vmatprep.subr.mxu0 0.0
    %1767 = vmatpush1.msra.mxu0 %v1591
    %1768 = vmatprep.subr.mxu0 0.0
    %1769 = vmatpush1.msra.mxu0 %v1592
    %1770 = vmatprep.subr.mxu0 0.0
    %1771 = vmatpush1.msra.mxu0 %v1593
    %1772 = vmatprep.mubr.f32.mxu0 %v1516
    %1773 = vmatmul.mubr.f32.gmra.mrb[0].mxu0 %v1510
    %v1774 = vpop.f32.mrb[0].mxu0
    %v1775 = vadd.f32 %v1700, %v1774
    %v1776 = vpop.f32.mrb[0].mxu0
    %1777 = vmatprep.mubr.f32.mxu0 %v1517
    %1778 = vmatmul.mubr.f32.gmra.mrb[0].mxu0 %v1511
    %v1779 = vpop.f32.mrb[0].mxu0
    %v1780 = vadd.f32 %v1705, %v1779
    %v1781 = vpop.f32.mrb[0].mxu0
    %1782 = vdwg.mxu0
    %1783 = vmatprep.subr.mxu0 0.0
    %1784 = vmatpush1.msra.mxu0 %v1594
    %1785 = vmatprep.subr.mxu0 0.0
    %1786 = vmatpush1.msra.mxu0 %v1595
    %1787 = vmatprep.subr.mxu0 0.0
    %1788 = vmatpush1.msra.mxu0 %v1596
    %1789 = vmatprep.subr.mxu0 0.0
    %1790 = vmatpush1.msra.mxu0 %v1597
    %1791 = vmatprep.subr.mxu0 0.0
    %1792 = vmatpush1.msra.mxu0 %v1598
    %1793 = vmatprep.subr.mxu0 0.0
    %1794 = vmatpush1.msra.mxu0 %v1599
    %1795 = vmatprep.subr.mxu0 0.0
    %1796 = vmatpush1.msra.mxu0 %v1600
    %1797 = vmatprep.subr.mxu0 0.0
    %1798 = vmatpush1.msra.mxu0 %v1601
    %1799 = vmatprep.subr.mxu0 0.0
    %1800 = vmatpush1.msra.mxu0 %v1602
    %1801 = vmatprep.subr.mxu0 0.0
    %1802 = vmatpush1.msra.mxu0 %v1603
    %1803 = vmatprep.subr.mxu0 0.0
    %1804 = vmatpush1.msra.mxu0 %v1604
    %1805 = vmatprep.subr.mxu0 0.0
    %1806 = vmatpush1.msra.mxu0 %v1605
    %1807 = vmatprep.subr.mxu0 0.0
    %1808 = vmatpush1.msra.mxu0 %v1606
    %1809 = vmatprep.subr.mxu0 0.0
    %1810 = vmatpush1.msra.mxu0 %v1607
    %1811 = vmatprep.subr.mxu0 0.0
    %1812 = vmatpush1.msra.mxu0 %v1608
    %1813 = vmatprep.subr.mxu0 0.0
    %1814 = vmatpush1.msra.mxu0 %v1609
    %1815 = vmatprep.subr.mxu0 0.0
    %1816 = vmatpush1.msra.mxu0 %v1610
    %1817 = vmatprep.subr.mxu0 0.0
    %1818 = vmatpush1.msra.mxu0 %v1611
    %1819 = vmatprep.subr.mxu0 0.0
    %1820 = vmatpush1.msra.mxu0 %v1612
    %1821 = vmatprep.subr.mxu0 0.0
    %1822 = vmatpush1.msra.mxu0 %v1613
    %1823 = vmatprep.subr.mxu0 0.0
    %1824 = vmatpush1.msra.mxu0 %v1614
    %1825 = vmatprep.subr.mxu0 0.0
    %1826 = vmatpush1.msra.mxu0 %v1615
    %1827 = vmatprep.subr.mxu0 0.0
    %1828 = vmatpush1.msra.mxu0 %v1616
    %1829 = vmatprep.subr.mxu0 0.0
    %1830 = vmatpush1.msra.mxu0 %v1617
    %1831 = vmatprep.subr.mxu0 0.0
    %1832 = vmatpush1.msra.mxu0 %v1618
    %1833 = vmatprep.subr.mxu0 0.0
    %1834 = vmatpush1.msra.mxu0 %v1619
    %1835 = vmatprep.subr.mxu0 0.0
    %1836 = vmatpush1.msra.mxu0 %v1620
    %1837 = vmatprep.subr.mxu0 0.0
    %1838 = vmatpush1.msra.mxu0 %v1621
    %1839 = vmatprep.subr.mxu0 0.0
    %1840 = vmatpush1.msra.mxu0 %v1622
    %1841 = vmatprep.subr.mxu0 0.0
    %1842 = vmatpush1.msra.mxu0 %v1623
    %1843 = vmatprep.subr.mxu0 0.0
    %1844 = vmatpush1.msra.mxu0 %v1624
    %1845 = vmatprep.subr.mxu0 0.0
    %1846 = vmatpush1.msra.mxu0 %v1625
    %1847 = vmatprep.mubr.f32.mxu0 %v1528
    %1848 = vmatmul.mubr.f32.gmra.mrb[0].mxu0 %v1522
    %v1849 = vpop.f32.mrb[0].mxu0
    %v1850 = vadd.f32 %v1775, %v1849
    %v1851 = vpop.f32.mrb[0].mxu0
    %1852 = vmatprep.mubr.f32.mxu0 %v1529
    %1853 = vmatmul.mubr.f32.gmra.mrb[0].mxu0 %v1523
    %v1854 = vpop.f32.mrb[0].mxu0
    %v1855 = vadd.f32 %v1780, %v1854
    %v1856 = vpop.f32.mrb[0].mxu0
    %1857 = vdwg.mxu0
    %1858 = vst [vmem:[#allocation8] sm:$0xff] %v1850
    %1859 = vst [vmem:[#allocation8 + $0x8] sm:$0xff] %v1855
    // Predicated region
    $region30: #{tpu_custom_call.1} parent=1 // pred_check
      _
    $region31: #{tpu_custom_call.1} parent=1 // pred_check_branch
      %1861 = sbr.rel (0) target = $region33
    $region32: #{tpu_custom_call.1} parent=1 // pred_region
      %s1863 = ssub.s32 256, 256
      %1864 = vsyncadd [#allocation4], %s1863
      %s1865 = sshll.u32 [#allocation8], 4
      %s1866 = int_to_ptr.vmem [resolvable:$true] %s1865
      %1871 = dma.vmem_to_hbm [thread:$0]  %s1866, 256, %s4, [#allocation4], 128, 128, 8
    $region33: #{tpu_custom_call.1} parent=1 // pred_fallthru
      _
    // Predicated region
    $region34: #{tpu_custom_call.1} parent=1 // pred_check
      _
    $region35: #{tpu_custom_call.1} parent=1 // pred_check_branch
      %1873 = sbr.rel (0) target = $region37
    $region36: #{tpu_custom_call.1} parent=1 // pred_region
      %1874 = dma.done [#allocation4], 256
    $region37: #{tpu_custom_call.1} parent=1 // pred_fallthru
      _
    %1875 = vsyncpa [#allocation3], 1
    %1876 = vsyncpa [#allocation6], 1
    %1877 = vsyncpa [#allocation4], 1

</llo_original>
